<compile_context>
chip_gen: v5e
topology: v5e:2x2
jax: 0.10.0
libtpu: 0.0.40
codegen_flags: <defaults>
</compile_context>

<pallas_src>
from functools import partial

import numpy as np
import jax
import jax.numpy as jnp
from jax import lax
from jax.experimental import pallas as pl
from jax.experimental.pallas import tpu as pltpu

LAM = 0.1

# dtype used to STREAM the adjacency row tiles (the dominant HBM traffic).
# Kernel math (upcast, MXU accumulate, epilogue) stays f32.
MXU_DTYPE = jnp.bfloat16


# ---------------------------------------------------------------------------
# helpers
# ---------------------------------------------------------------------------
def _lane_pad(c):
    return max(128, ((c + 127) // 128) * 128)


def _vmem_capacity_bytes():
    """Physical VMEM of the current generation; conservative 64 MiB (v7x) fallback."""
    try:
        info = pltpu.get_tpu_info()
        cap = getattr(info, "vmem_capacity_bytes", None)
        if cap:
            return int(cap)
    except Exception:
        pass
    return 64 << 20


def _pick_row_tile(n_rows, row_bytes, budget_bytes):
    """Largest power-of-two row tile that divides n_rows and whose double-buffered
    tile fits the budget.  Callers pad n_rows to a multiple of 128."""
    for tm in (2048, 1024, 512, 256, 128):
        if n_rows % tm == 0 and 2 * tm * row_bytes <= budget_bytes:
            return tm
    return min(n_rows, 128)


def _pick_gram_tile(n_rows):
    for t in (512, 256, 128, 64, 32, 16, 8):
        if n_rows % t == 0:
            return t
    return n_rows


# ---------------------------------------------------------------------------
# Pallas kernels
# ---------------------------------------------------------------------------
def _prop_kernel(a_ref, vs_ref, d_ref, o_ref):
    """Row tile of A_norm @ v with the self-loop folded in.

    With d = 1/sqrt(deg+1) and vs = d ⊙ v (resident, f32):
        (A_norm v)_row = d_row * (A_row @ vs + vs_row)
    a_ref: (tm, n) bf16 row tile of raw A (streamed); vs_ref: (n, f) resident f32;
    d_ref: (tm, 1) f32; o_ref: (tm, f) f32.
    """
    tm = o_ref.shape[0]
    row0 = pl.multiple_of(pl.program_id(0) * tm, 8)
    d = d_ref[...]                                                    # (tm, 1) f32
    a = a_ref[...].astype(jnp.float32)                                # bf16 -> f32 (VPU; mem-bound)
    av = jnp.dot(a, vs_ref[...], preferred_element_type=jnp.float32)  # (tm, f) MXU
    # self-loop term d^2*v == d*vs_row: slice the already-resident vs block
    o_ref[...] = d * (av + vs_ref[pl.ds(row0, tm), :])


def _gram_kernel(z_ref, w_ref, s_ref):
    """Grid reduction over sample tiles:  S = Z^T diag(w) Z (+ lam*I on last step)."""
    @pl.when(pl.program_id(0) == 0)
    def _():
        s_ref[...] = jnp.zeros_like(s_ref)

    z = z_ref[...]                                                     # (tile, f2)
    zw = z * w_ref[...]                                                # diag(w) @ Z
    s_ref[...] += lax.dot_general(z, zw, (((0,), (0,)), ((), ())),
                                  preferred_element_type=jnp.float32)

    @pl.when(pl.program_id(0) == pl.num_programs(0) - 1)
    def _():
        f2 = s_ref.shape[0]
        row = lax.broadcasted_iota(jnp.int32, (f2, f2), 0)
        col = lax.broadcasted_iota(jnp.int32, (f2, f2), 1)
        # extra lam on the unused (y^T W y) corner is never read back
        s_ref[...] += jnp.where(row == col, jnp.float32(LAM), jnp.float32(0.0))


# ---------------------------------------------------------------------------
# pallas_call wrappers
# ---------------------------------------------------------------------------
def propagate_pallas(A_m, v, d, *, tm=None):
    """One application of the normalized propagation operator: A_norm @ v.

    A_m: (n, n) adjacency already cast to MXU_DTYPE (shared by both calls).
    v, d: f32 (n, f) / (n, 1).  n must be a multiple of 128 (caller pads).
    """
    n, f = v.shape
    a_bytes = jnp.dtype(A_m.dtype).itemsize
    fpad = _lane_pad(f)

    vmem_cap = _vmem_capacity_bytes()              # 128 MiB v5e/v6e, 64 MiB v7x
    cap_limit = int(vmem_cap * 0.6)                # headroom for compiler scratch
    a_budget = min(vmem_cap // 4, 32 << 20)        # double-buffered A-tile budget

    if tm is None:
        tm = _pick_row_tile(n, n * a_bytes, a_budget)
    assert n % tm == 0 and tm % 16 == 0, (n, tm)

    def vmem_need(t):
        return (2 * t * n * a_bytes      # A row tile (double buffered, bf16)
                + t * n * 4              # f32 upcast consumed by the MXU
                + 2 * n * fpad * 4       # resident d⊙v (lane-padded)
                + 2 * t * 128 * 4        # d row tile
                + 2 * t * fpad * 4)      # output tile

    # shrink tile (never clamp the limit below the requirement)
    while vmem_need(tm) > cap_limit and tm >= 32 and n % (tm // 2) == 0:
        tm //= 2
    vmem_limit = max(vmem_need(tm) + (4 << 20), 32 << 20)
    vmem_limit = min(vmem_limit, cap_limit)
    vmem_limit = int(max(vmem_limit, vmem_need(tm) + (2 << 20)))

    vs = (d * v).astype(jnp.float32)      # fold D^-1/2 column scaling once, keep f32

    return pl.pallas_call(
        _prop_kernel,
        out_shape=jax.ShapeDtypeStruct((n, f), jnp.float32),
        grid=(n // tm,),
        in_specs=[
            pl.BlockSpec((tm, n), lambda i: (i, 0)),     # A row tile (streamed, bf16)
            pl.BlockSpec((n, f), lambda i: (0, 0)),      # d⊙v, resident f32
            pl.BlockSpec((tm, 1), lambda i: (i, 0)),     # d row tile
        ],
        out_specs=pl.BlockSpec((tm, f), lambda i: (i, 0)),
        compiler_params=pltpu.CompilerParams(
            dimension_semantics=("parallel",),           # shard row blocks across TCs
            vmem_limit_bytes=vmem_limit),
        cost_estimate=pl.CostEstimate(
            flops=2 * n * n * f + 4 * n * f,
            transcendentals=0,
            bytes_accessed=a_bytes * n * n + 4 * (3 * n * f + n)),
    )(A_m, vs, d)


def gram_pallas(Z, w, *, tile=None):
    """S = Z^T diag(w) Z + lam*I, reduced over the sample axis."""
    nt, f2 = Z.shape
    if tile is None:
        tile = _pick_gram_tile(nt)
    assert nt % tile == 0 and (tile % 8 == 0 or tile == nt), (nt, tile)

    return pl.pallas_call(
        _gram_kernel,
        out_shape=jax.ShapeDtypeStruct((f2, f2), jnp.float32),
        grid=(nt // tile,),
        in_specs=[pl.BlockSpec((tile, f2), lambda k: (k, 0)),
                  pl.BlockSpec((tile, 1), lambda k: (k, 0))],
        out_specs=pl.BlockSpec((f2, f2), lambda k: (0, 0)),   # resident accumulator
        compiler_params=pltpu.CompilerParams(
            dimension_semantics=("arbitrary",)),              # reduction axis
    )(Z, w)


# ---------------------------------------------------------------------------
# Surrogate_GNN.forward
# ---------------------------------------------------------------------------
@partial(jax.jit, static_argnums=(1, 2), static_argnames=("row_tile", "gram_tile"))
def surrogate_gnn_forward(tri, n_node, feat_dim, train_idx, test_idx, x, y_train,
                          *, row_tile=None, gram_tile=None):
    # pad n to a multiple of 128 so every row/lane tile is full (no ragged fallback)
    n_pad = max(128, ((n_node + 127) // 128) * 128)

    # adjacency_matrix(): COO(strict-upper-triangle indices, self.edge) -> dense, symmetrize.
    rows = tri[:, 0].astype(jnp.int32)
    cols = tri[:, 1].astype(jnp.int32)
    edge = tri[:, 2].astype(jnp.float32)
    A = jnp.zeros((n_pad, n_pad), jnp.float32).at[rows, cols].add(edge)
    A = A + A.T - jnp.diag(jnp.diag(A))

    # deg(A + I); A is symmetric by construction so sum(0) == sum(1).
    # Padded rows/cols are all-zero -> d = 1 there, and padded v rows are zero,
    # so padded outputs stay zero and never leak into real rows.
    d = (1.0 / jnp.sqrt(jnp.sum(A, axis=0) + 1.0)).reshape(n_pad, 1)

    # single bf16 copy of A shared by both propagate passes (halves streamed bytes)
    A_m = A.astype(MXU_DTYPE)

    # feat(): H = A_norm @ (A_norm @ x), two row-tiled pipelined passes over A.
    x32 = jnp.pad(x.astype(jnp.float32), ((0, n_pad - n_node), (0, 0)))
    T = propagate_pallas(A_m, x32, d, tm=row_tile)
    H_pad = propagate_pallas(A_m, T, d, tm=row_tile)
    H = H_pad[:n_node]

    H_train = H[train_idx]
    nt = H_train.shape[0]

    y = y_train.reshape(-1, 1).astype(jnp.float32)
    n_pos = jnp.sum(y_train == 1)
    n_neg = jnp.sum(y_train == 0)
    # guard against a training slice with no positives (would be inf in the original)
    pos_weight = jnp.where(n_pos > 0,
                           n_neg / jnp.maximum(n_pos, 1),
                           jnp.int32(1)).astype(jnp.float32)
    w = jnp.where(y == 1.0, pos_weight, jnp.float32(1.0)).astype(jnp.float32)

    # weighted normal equations in one fused MXU pass:
    #   Z = [1 | H_train | y];  S = Z^T diag(w) Z + lam*I
    #   G = S[:f1,:f1] = H1^T W H1 + lam*I ;  b = S[:f1, f1] = H1^T W y
    Z = jnp.concatenate([jnp.ones((nt, 1), jnp.float32), H_train, y], axis=1)
    nt_pad = ((nt + 7) // 8) * 8
    if nt_pad != nt:                       # zero rows contribute nothing to S
        Z = jnp.pad(Z, ((0, nt_pad - nt), (0, 0)))
        w = jnp.pad(w, ((0, nt_pad - nt), (0, 0)))
    S = gram_pallas(Z, w, tile=gram_tile)
    f1 = feat_dim + 1
    G = S[:f1, :f1]
    b = S[:f1, f1:f1 + 1]

    # TODO(synk): the tiny (feat_dim+1)^2 dense solve has no useful Pallas equivalent;
    # kept in plain JAX (not a hot path).
    theta = jnp.linalg.solve(G, b)
    bias = theta[0, 0]
    weight = theta[1:]                     # (feat_dim, 1)

    # prediction folded into plain XLA per perf review (microscopic work; Pallas
    # version would write a lane-sparse (tm, 1) block and re-fetch weight each step).
    probs = jax.nn.sigmoid(H @ weight + bias)
    return probs[train_idx], probs[test_idx]


# ---------------------------------------------------------------------------
# pure numpy (float64) reference of the PyTorch forward, for validation
# ---------------------------------------------------------------------------
def reference_forward(tri, n_node, feat_dim, train_idx, test_idx, x, y_train):
    tri = np.asarray(tri, np.float64)
    x = np.asarray(x, np.float64)
    y = np.asarray(y_train, np.float64).reshape(-1, 1)
    A = np.zeros((n_node, n_node))
    A[tri[:, 0].astype(int), tri[:, 1].astype(int)] = tri[:, 2]
    A = A + A.T - np.diag(np.diag(A))
    A1 = A + np.eye(n_node)
    dd = 1.0 / np.sqrt(A1.sum(0))
    A_norm = dd[:, None] * A1 * dd[None, :]
    A2 = A_norm @ A_norm
    H = A2 @ x
    H_train = H[np.asarray(train_idx)]
    H_test = H[np.asarray(test_idx)]
    H1 = np.concatenate([np.ones((len(H_train), 1)), H_train], axis=1)
    pos_weight = (y == 0).sum() / (y == 1).sum()
    w = np.where(y == 1, pos_weight, 1.0)
    W = np.diag(w[:, 0])
    I = np.eye(feat_dim + 1)
    theta = np.linalg.inv(H1.T @ W @ H1 + LAM * I) @ H1.T @ W @ y
    bias = theta[0, 0]
    weight = theta[1:]
    sig = lambda z: 1.0 / (1.0 + np.exp(-z))
    return sig(H_train @ weight + bias), sig(H_test @ weight + bias)


if __name__ == "__main__":
    key = jax.random.PRNGKey(0)
    k_adj, k_x = jax.random.split(key)

    n_node, feat_dim = 256, 16

    # synthetic binary adjacency label -> triple (i, j, A[i, j]) over the strict upper triangle
    up = jax.random.bernoulli(k_adj, 0.1, (n_node, n_node)).astype(jnp.float32)
    iu, ju = np.triu_indices(n_node, k=1)
    tri_np = np.concatenate(
        [iu.reshape(-1, 1).astype(np.float32),
         ju.reshape(-1, 1).astype(np.float32),
         np.asarray(up)[iu, ju].reshape(-1, 1).astype(np.float32)], axis=1)
    tri = jnp.asarray(tri_np, jnp.float32)

    attrs = jax.random.normal(k_x, (n_node, feat_dim), jnp.float32)
    train_idx = jnp.arange(0, 128, dtype=jnp.int32)
    test_idx = jnp.arange(128, 256, dtype=jnp.int32)
    label = (jnp.arange(n_node) % 3 == 0).astype(jnp.float32)   # mixed 0/1 labels
    y_train = label[train_idx]

    # row_tile=128 / gram_tile=64 exercise multi-step grids (pipeline + reduction)
    out_train, out_test = surrogate_gnn_forward(
        tri, n_node, feat_dim, train_idx, test_idx, attrs, y_train,
        row_tile=128, gram_tile=64)
    jax.block_until_ready((out_train, out_test))

    ref_train, ref_test = reference_forward(
        tri_np, n_node, feat_dim, np.asarray(train_idx), np.asarray(test_idx),
        np.asarray(attrs), np.asarray(y_train))

    assert out_train.shape == (128, 1) and out_test.shape == (128, 1)
    # binary edges are exact in bf16; all other math stays f32, so the f32 tolerance holds
    assert np.allclose(np.asarray(out_train), ref_train, atol=2e-3, rtol=2e-3)
    assert np.allclose(np.asarray(out_test), ref_test, atol=2e-3, rtol=2e-3)
    print("KERNEL_OK")
</pallas_src>

<mosaic_0001>
module attributes {stable_mosaic.version = 11 : i64} {
  func.func @_prop_kernel(%arg0: i32, %arg1: memref<128x256xbf16, #tpu.memory_space<vmem>>, %arg2: memref<256x16xf32, #tpu.memory_space<vmem>>, %arg3: memref<128x1xf32, #tpu.memory_space<vmem>>, %arg4: memref<128x16xf32, #tpu.memory_space<vmem>>) attributes {dimension_semantics = [#tpu.dimension_semantics<parallel>], iteration_bounds = array<i64: 2>, scalar_prefetch = 0 : i64, scratch_operands = 0 : i64, tpu.core_type = #tpu.core_type<tc>, window_params = [{transform_indices = @transform_0, window_bounds = array<i64: 128, 256>}, {pipeline_mode = #tpu.pipeline_mode<synchronous>, transform_indices = @transform_1, window_bounds = array<i64: 256, 16>}, {transform_indices = @transform_2, window_bounds = array<i64: 128, 1>}, {transform_indices = @transform_3, window_bounds = array<i64: 128, 16>}]} {
    %c128_i32 = arith.constant 128 : i32
    %0 = arith.muli %arg0, %c128_i32 : i32
    %1 = tpu.assume_multiple %0, 8 : i32
    %c0 = arith.constant 0 : index
    %c0_0 = arith.constant 0 : index
    %2 = vector.load %arg3[%c0, %c0_0] : memref<128x1xf32, #tpu.memory_space<vmem>>, vector<128x1xf32>
    %c0_1 = arith.constant 0 : index
    %c0_2 = arith.constant 0 : index
    %3 = vector.load %arg1[%c0_1, %c0_2] : memref<128x256xbf16, #tpu.memory_space<vmem>>, vector<128x256xbf16>
    %4 = arith.extf %3 : vector<128x256xbf16> to vector<128x256xf32>
    %c0_3 = arith.constant 0 : index
    %c0_4 = arith.constant 0 : index
    %5 = vector.load %arg2[%c0_3, %c0_4] : memref<256x16xf32, #tpu.memory_space<vmem>>, vector<256x16xf32>
    %cst = arith.constant dense<0.000000e+00> : vector<128x16xf32>
    %6 = tpu.matmul %4, %5, %cst {dimension_numbers = #tpu.dot_dimension_numbers<[1], [0], [0], [1], [0, 0, 1, 1], [], []>} : vector<128x256xf32>, vector<256x16xf32>, vector<128x16xf32> -> vector<128x16xf32>
    %7 = arith.index_cast %1 : i32 to index
    %c0_5 = arith.constant 0 : index
    %8 = vector.load %arg2[%7, %c0_5] : memref<256x16xf32, #tpu.memory_space<vmem>>, vector<128x16xf32>
    %9 = arith.addf %6, %8 : vector<128x16xf32>
    %10 = vector.broadcast %2 : vector<128x1xf32> to vector<128x16xf32>
    %11 = arith.mulf %10, %9 : vector<128x16xf32>
    %c0_6 = arith.constant 0 : index
    %c0_7 = arith.constant 0 : index
    %12 = vector.load %arg4[%c0_6, %c0_7] : memref<128x16xf32, #tpu.memory_space<vmem>>, vector<128x16xf32>
    tpu.vector_store %arg4[%c0_6, %c0_7], %11 {strides = array<i32>} : memref<128x16xf32, #tpu.memory_space<vmem>>, vector<128x16xf32>,
    return
  }
  func.func @transform_0(%arg0: i32) -> (i32, i32) {
    %c0_i32 = arith.constant 0 : i32
    %c0_i32_0 = arith.constant 0 : i32
    return %arg0, %c0_i32 : i32, i32
  }
  func.func @transform_1(%arg0: i32) -> (i32, i32) {
    %c0_i32 = arith.constant 0 : i32
    %c0_i32_0 = arith.constant 0 : i32
    %c0_i32_1 = arith.constant 0 : i32
    return %c0_i32, %c0_i32_0 : i32, i32
  }
  func.func @transform_2(%arg0: i32) -> (i32, i32) {
    %c0_i32 = arith.constant 0 : i32
    %c0_i32_0 = arith.constant 0 : i32
    return %arg0, %c0_i32 : i32, i32
  }
  func.func @transform_3(%arg0: i32) -> (i32, i32) {
    %c0_i32 = arith.constant 0 : i32
    %c0_i32_0 = arith.constant 0 : i32
    return %arg0, %c0_i32 : i32, i32
  }
}

module attributes {stable_mosaic.version = 11 : i64} {
  func.func @_gram_kernel(%arg0: i32, %arg1: memref<64x18xf32, #tpu.memory_space<vmem>>, %arg2: memref<64x1xf32, #tpu.memory_space<vmem>>, %arg3: memref<18x18xf32, #tpu.memory_space<vmem>>) attributes {dimension_semantics = [#tpu.dimension_semantics<arbitrary>], iteration_bounds = array<i64: 2>, scalar_prefetch = 0 : i64, scratch_operands = 0 : i64, tpu.core_type = #tpu.core_type<tc>, window_params = [{transform_indices = @transform_0, window_bounds = array<i64: 64, 18>}, {transform_indices = @transform_1, window_bounds = array<i64: 64, 1>}, {pipeline_mode = #tpu.pipeline_mode<synchronous>, transform_indices = @transform_2, window_bounds = array<i64: 18, 18>}]} {
    %c0_i32 = arith.constant 0 : i32
    %0 = arith.cmpi eq, %arg0, %c0_i32 : i32
    %1 = arith.extui %0 : i1 to i32
    %c0_i32_0 = arith.constant 0 : i32
    %2 = arith.cmpi ne, %1, %c0_i32_0 : i32
    scf.if %2 {
      %cst_9 = arith.constant 0.000000e+00 : f32
      %14 = vector.broadcast %cst_9 : f32 to vector<18x18xf32>
      %c0_10 = arith.constant 0 : index
      %c0_11 = arith.constant 0 : index
      %15 = vector.load %arg3[%c0_10, %c0_11] : memref<18x18xf32, #tpu.memory_space<vmem>>, vector<18x18xf32>
      tpu.vector_store %arg3[%c0_10, %c0_11], %14 {strides = array<i32>} : memref<18x18xf32, #tpu.memory_space<vmem>>, vector<18x18xf32>,
    } else {
    }
    %c0 = arith.constant 0 : index
    %c0_1 = arith.constant 0 : index
    %3 = vector.load %arg1[%c0, %c0_1] : memref<64x18xf32, #tpu.memory_space<vmem>>, vector<64x18xf32>
    %c0_2 = arith.constant 0 : index
    %c0_3 = arith.constant 0 : index
    %4 = vector.load %arg2[%c0_2, %c0_3] : memref<64x1xf32, #tpu.memory_space<vmem>>, vector<64x1xf32>
    %5 = vector.broadcast %4 : vector<64x1xf32> to vector<64x18xf32>
    %6 = arith.mulf %3, %5 : vector<64x18xf32>
    %c0_4 = arith.constant 0 : index
    %c0_5 = arith.constant 0 : index
    %7 = vector.load %arg3[%c0_4, %c0_5] : memref<18x18xf32, #tpu.memory_space<vmem>>, vector<18x18xf32>
    %cst = arith.constant dense<0.000000e+00> : vector<18x18xf32>
    %8 = tpu.matmul %3, %6, %cst {dimension_numbers = #tpu.dot_dimension_numbers<[0], [0], [1], [1], [0, 1, 1, 1], [], []>} : vector<64x18xf32>, vector<64x18xf32>, vector<18x18xf32> -> vector<18x18xf32>
    %9 = arith.addf %7, %8 : vector<18x18xf32>
    %c0_6 = arith.constant 0 : index
    %c0_7 = arith.constant 0 : index
    %10 = vector.load %arg3[%c0_6, %c0_7] : memref<18x18xf32, #tpu.memory_space<vmem>>, vector<18x18xf32>
    tpu.vector_store %arg3[%c0_6, %c0_7], %9 {strides = array<i32>} : memref<18x18xf32, #tpu.memory_space<vmem>>, vector<18x18xf32>,
    %c1_i32 = arith.constant 1 : i32
    %11 = arith.cmpi eq, %arg0, %c1_i32 : i32
    %12 = arith.extui %11 : i1 to i32
    %c0_i32_8 = arith.constant 0 : i32
    %13 = arith.cmpi ne, %12, %c0_i32_8 : i32
    scf.if %13 {
      %14 = tpu.iota {dimensions = array<i32: 0>} : vector<18x18xi32>
      %15 = tpu.iota {dimensions = array<i32: 1>} : vector<18x18xi32>
      %c0_9 = arith.constant 0 : index
      %c0_10 = arith.constant 0 : index
      %16 = vector.load %arg3[%c0_9, %c0_10] : memref<18x18xf32, #tpu.memory_space<vmem>>, vector<18x18xf32>
      %17 = arith.cmpi eq, %14, %15 : vector<18x18xi32>
      %cst_11 = arith.constant 1.000000e-01 : f32
      %cst_12 = arith.constant 0.000000e+00 : f32
      %18 = vector.broadcast %cst_11 : f32 to vector<18x18xf32>
      %19 = vector.broadcast %cst_12 : f32 to vector<18x18xf32>
      %20 = arith.select %17, %18, %19 : vector<18x18xi1>, vector<18x18xf32>
      %21 = arith.addf %16, %20 : vector<18x18xf32>
      %c0_13 = arith.constant 0 : index
      %c0_14 = arith.constant 0 : index
      %22 = vector.load %arg3[%c0_13, %c0_14] : memref<18x18xf32, #tpu.memory_space<vmem>>, vector<18x18xf32>
      tpu.vector_store %arg3[%c0_13, %c0_14], %21 {strides = array<i32>} : memref<18x18xf32, #tpu.memory_space<vmem>>, vector<18x18xf32>,
    } else {
    }
    return
  }
  func.func @transform_0(%arg0: i32) -> (i32, i32) {
    %c0_i32 = arith.constant 0 : i32
    %c0_i32_0 = arith.constant 0 : i32
    return %arg0, %c0_i32 : i32, i32
  }
  func.func @transform_1(%arg0: i32) -> (i32, i32) {
    %c0_i32 = arith.constant 0 : i32
    %c0_i32_0 = arith.constant 0 : i32
    return %arg0, %c0_i32 : i32, i32
  }
  func.func @transform_2(%arg0: i32) -> (i32, i32) {
    %c0_i32 = arith.constant 0 : i32
    %c0_i32_0 = arith.constant 0 : i32
    %c0_i32_1 = arith.constant 0 : i32
    return %c0_i32, %c0_i32_0 : i32, i32
  }
}

</mosaic_0001>

<llo_original>
// kernel: surrogate_gnn_forward.3
$region0: #{surrogate_gnn_forward.3}
  #allocation0 [shape = 'u32[]', space=smem, size = 0x4, offset = 0x4, fixed_abs, tag = 'smem constant byte address 0x4 - core index']
  #allocation1 [shape = 'u32[72,128]{1,0:T(1,128)}', space=vmem, size = 0x9000, scoped, tag = 'internal scratch']
  %s0 = inlined_call_operand.vmem [shape: bf16[256,256], index: 0, kind: input, shape index: {}]
  %s1 = inlined_call_operand.vmem [shape: f32[256,16], index: 1, kind: input, shape index: {}]
  %s2 = inlined_call_operand.vmem [shape: f32[256,1], index: 2, kind: input, shape index: {}]
  %s3 = inlined_call_operand.vmem [shape: f32[256,16], index: 3, kind: output, shape index: {}]
  %s4 = sld [smem:[#allocation0]]
  $region45: #{surrogate_gnn_forward.3} parent=0
    _
  %s6 = ssub.s32 1, %s4
  %s7 = scalar_select 0, %s6, %s4
  loop: start=0, step=1, limit=4
  $region2: #{surrogate_gnn_forward.3} parent=0 // loop_pre_header
    _
  $region3: #{surrogate_gnn_forward.3} parent=0 // loop_header
    %s9 = sphi 0, %s13
    %p10 = scmp.ge.s32.totalorder %s9, 4
    %s19 = sphi 0, %s21
    %s22 = sphi 0, %s19
    %s23 = sphi 0, %s22
    %s39 = sphi 0, %s23
    %s43 = sphi 0, %s43
    %s45 = sphi 0, %s43
    %s46 = sphi 0, %s45
    %s60 = sphi 0, %s46
    %s66 = sphi 0, %s68
    %s69 = sphi 0, %s66
    %s70 = sphi 0, %s69
    %s86 = sphi 0, %s70
    %s92 = sphi 0, %s94
    %s95 = sphi 0, %s92
    %s96 = sphi 0, %s95
    %s112 = sphi 0, %s96
  $region4: #{surrogate_gnn_forward.3} parent=0 // loop_header_branch
    %12 = sbr.rel (%p10) target = $region8
  $region5: #{surrogate_gnn_forward.3} parent=0 // loop_body
    %s14 = ssub.s32 %s9, 1
    %s15 = ssub.s32 %s9, 2
    %s16 = sadd.s32 %s9, 1
    %s17 = ssub.s32 %s9, %s16
    %p18 = scmp.eq.s32.totalorder %s17, 0
    %s20 = sadd.s32 %s19, 1
    %s21 = scalar_select %p18, %s19, %s20
    %p24 = pneg %p18
    %p25 = scmp.eq.s32.totalorder %s9, 1
    %p26 = por %p24, %p25
    %p27 = scmp.ne.s32.totalorder %s19, %s22
    %p28 = scmp.eq.s32.totalorder %s9, 0
    %p29 = por %p27, %p28
    %p30 = scmp.ne.s32.totalorder %s19, %s22
    %p31 = scmp.eq.s32.totalorder %s14, 1
    %p32 = por %p30, %p31
    %p33 = scmp.ne.s32.totalorder %s22, %s23
    %p34 = scmp.eq.s32.totalorder %s14, 0
    %p35 = por %p33, %p34
    %p36 = scmp.ne.s32.totalorder %s22, %s23
    %p37 = scmp.eq.s32.totalorder %s15, 1
    %p38 = por %p36, %p37
    %p40 = scmp.ne.s32.totalorder %s23, %s39
    %p41 = scmp.eq.s32.totalorder %s15, 0
    %p42 = por %p40, %p41
    %s44 = sadd.s32 %s43, 1
    %p47 = scmp.eq.s32.totalorder %s9, 1
    %p48 = scmp.ne.s32.totalorder %s43, %s45
    %p49 = scmp.eq.s32.totalorder %s9, 0
    %p50 = por %p48, %p49
    %p51 = scmp.ne.s32.totalorder %s43, %s45
    %p52 = scmp.eq.s32.totalorder %s14, 1
    %p53 = por %p51, %p52
    %p54 = scmp.ne.s32.totalorder %s45, %s46
    %p55 = scmp.eq.s32.totalorder %s14, 0
    %p56 = por %p54, %p55
    %p57 = scmp.ne.s32.totalorder %s45, %s46
    %p58 = scmp.eq.s32.totalorder %s15, 1
    %p59 = por %p57, %p58
    %p61 = scmp.ne.s32.totalorder %s46, %s60
    %p62 = scmp.eq.s32.totalorder %s15, 0
    %p63 = por %p61, %p62
    %s64 = ssub.s32 %s9, %s16
    %p65 = scmp.eq.s32.totalorder %s64, 0
    %s67 = sadd.s32 %s66, 1
    %s68 = scalar_select %p65, %s66, %s67
    %p71 = pneg %p65
    %p72 = scmp.eq.s32.totalorder %s9, 1
    %p73 = por %p71, %p72
    %p74 = scmp.ne.s32.totalorder %s66, %s69
    %p75 = scmp.eq.s32.totalorder %s9, 0
    %p76 = por %p74, %p75
    %p77 = scmp.ne.s32.totalorder %s66, %s69
    %p78 = scmp.eq.s32.totalorder %s14, 1
    %p79 = por %p77, %p78
    %p80 = scmp.ne.s32.totalorder %s69, %s70
    %p81 = scmp.eq.s32.totalorder %s14, 0
    %p82 = por %p80, %p81
    %p83 = scmp.ne.s32.totalorder %s69, %s70
    %p84 = scmp.eq.s32.totalorder %s15, 1
    %p85 = por %p83, %p84
    %p87 = scmp.ne.s32.totalorder %s70, %s86
    %p88 = scmp.eq.s32.totalorder %s15, 0
    %p89 = por %p87, %p88
    %s90 = ssub.s32 %s9, %s16
    %p91 = scmp.eq.s32.totalorder %s90, 0
    %s93 = sadd.s32 %s92, 1
    %s94 = scalar_select %p91, %s92, %s93
    %p97 = pneg %p91
    %p98 = scmp.eq.s32.totalorder %s9, 1
    %p99 = por %p97, %p98
    %p100 = scmp.ne.s32.totalorder %s92, %s95
    %p101 = scmp.eq.s32.totalorder %s9, 0
    %p102 = por %p100, %p101
    %p103 = scmp.ne.s32.totalorder %s92, %s95
    %p104 = scmp.eq.s32.totalorder %s14, 1
    %p105 = por %p103, %p104
    %p106 = scmp.ne.s32.totalorder %s95, %s96
    %p107 = scmp.eq.s32.totalorder %s14, 0
    %p108 = por %p106, %p107
    %p109 = scmp.ne.s32.totalorder %s95, %s96
    %p110 = scmp.eq.s32.totalorder %s15, 1
    %p111 = por %p109, %p110
    %p113 = scmp.ne.s32.totalorder %s96, %s112
    %p114 = scmp.eq.s32.totalorder %s15, 0
    %p115 = por %p113, %p114
    %p116 = scmp.le.s32.totalorder 1, %s9
    %p117 = scmp.lt.s32.totalorder %s9, 3
    %p118 = pnand %p116, %p117
    %p119 = pneg %p118
    // Predicated region
    $region9: #{surrogate_gnn_forward.3} parent=5 // pred_check
      _
    $region10: #{surrogate_gnn_forward.3} parent=5 // pred_check_branch
      %121 = sbr.rel (%p118) target = $region12
    $region11: #{surrogate_gnn_forward.3} parent=5 // pred_region
      %s122 = ssub.s32 %s9, 1
      // Predicated region
      $region13: #{surrogate_gnn_forward.3} parent=11 // pred_check
        %p123 = pneg %p56
      $region14: #{surrogate_gnn_forward.3} parent=11 // pred_check_branch
        %125 = sbr.rel (%p123) target = $region16
      $region15: #{surrogate_gnn_forward.3} parent=11 // pred_region
        _
      $region16: #{surrogate_gnn_forward.3} parent=11 // pred_fallthru
        _
    $region12: #{surrogate_gnn_forward.3} parent=5 // pred_fallthru
      _
    %p126 = scmp.lt.s32.totalorder %s9, 2
    // Predicated region
    $region17: #{surrogate_gnn_forward.3} parent=5 // pred_check
      %p127 = pneg %p126
    $region18: #{surrogate_gnn_forward.3} parent=5 // pred_check_branch
      %129 = sbr.rel (%p127) target = $region20
    $region19: #{surrogate_gnn_forward.3} parent=5 // pred_region
      // Predicated region
      $region21: #{surrogate_gnn_forward.3} parent=19 // pred_check
        %p130 = pneg %p29
      $region22: #{surrogate_gnn_forward.3} parent=19 // pred_check_branch
        %132 = sbr.rel (%p130) target = $region24
      $region23: #{surrogate_gnn_forward.3} parent=19 // pred_region
        %s133 = smul.u32 16, %s9
        %p134 = scmp.lt.s32.totalorder %s133, 31
        %s135 = scalar_select %p134, %s133, 31
        %s136 = smul.addr %s135, 2
        %s137 = smul.addr %s136, 4
        %s138 = scalar_lea.vmem %s0, %s137
        %s139 = smul.u32 16, %s9
      $region24: #{surrogate_gnn_forward.3} parent=19 // pred_fallthru
        _
      // Predicated region
      $region25: #{surrogate_gnn_forward.3} parent=19 // pred_check
        %p140 = pneg %p76
      $region26: #{surrogate_gnn_forward.3} parent=19 // pred_check_branch
        %142 = sbr.rel (%p140) target = $region28
      $region27: #{surrogate_gnn_forward.3} parent=19 // pred_region
        %s143 = smul.u32 16, %s9
        %p144 = scmp.lt.s32.totalorder %s143, 31
        %s145 = scalar_select %p144, %s143, 31
        %s146 = smul.addr %s145, 8
        %s147 = scalar_lea.vmem %s2, %s146
        %s148 = smul.u32 16, %s9
      $region28: #{surrogate_gnn_forward.3} parent=19 // pred_fallthru
        _
    $region20: #{surrogate_gnn_forward.3} parent=5 // pred_fallthru
      _
    %p149 = scmp.le.s32.totalorder 1, %s9
    %p150 = scmp.lt.s32.totalorder %s9, 3
    %p151 = pnand %p149, %p150
    %p152 = pneg %p151
    // Predicated region
    $region29: #{surrogate_gnn_forward.3} parent=5 // pred_check
      _
    $region30: #{surrogate_gnn_forward.3} parent=5 // pred_check_branch
      %154 = sbr.rel (%p151) target = $region32
    $region31: #{surrogate_gnn_forward.3} parent=5 // pred_region
      %s155 = ssub.s32 %s9, 1
      %s156 = smul.u32 16, %s14
      %p157 = scmp.lt.s32.totalorder %s156, 31
      %s158 = scalar_select %p157, %s156, 31
      %s159 = smul.addr %s158, 2
      %s160 = smul.addr %s159, 4
      %s161 = scalar_lea.vmem %s0, %s160
      %p162 = pneg %p35
      %p163 = pneg %p32
      %p164 = pneg %p56
      %p165 = pneg %p53
      %s166 = smul.u32 16, %s14
      %p167 = scmp.lt.s32.totalorder %s166, 31
      %s168 = scalar_select %p167, %s166, 31
      %s169 = smul.addr %s168, 8
      %s170 = scalar_lea.vmem %s2, %s169
      %p171 = pneg %p82
      %p172 = pneg %p79
      %p173 = pneg %p108
      %p174 = pneg %p105
      %s175 = smul.u32 16, %s14
      %p176 = scmp.lt.s32.totalorder %s175, 31
      %s177 = scalar_select %p176, %s175, 31
      %s178 = smul.addr %s177, 8
      %s179 = scalar_lea.vmem %s3, %s178
      %s180 = smul.u32 16, %s14
      %p181 = scmp.lt.s32.totalorder %s180, 31
      %s182 = scalar_select %p181, %s180, 31
      %s183 = smul.addr %s182, 2
      %s184 = smul.addr %s183, 4
      %s185 = scalar_lea.vmem %s0, %s184
      %s186 = smul.u32 16, %s14
      %s187 = smul.u32 16, %s14
      %p188 = scmp.lt.s32.totalorder %s187, 31
      %s189 = scalar_select %p188, %s187, 31
      %s190 = smul.addr %s189, 8
      %s191 = scalar_lea.vmem %s2, %s190
      %s192 = smul.u32 16, %s14
      %s193 = smul.u32 16, %s14
      %p194 = scmp.lt.s32.totalorder %s193, 31
      %s195 = scalar_select %p194, %s193, 31
      %s196 = smul.addr %s195, 8
      %s197 = scalar_lea.vmem %s3, %s196
      %s198 = smul.u32 16, %s14
      %s199 = smul.u32 %s14, 128
      %v200 = vld [vmem:[%s191] sm:$0xff]
      %v201 = vld [vmem:[%s191 + $0x8] sm:$0xff]
      %v202 = vld [vmem:[%s191 + $0x10] sm:$0xff]
      %v203 = vld [vmem:[%s191 + $0x18] sm:$0xff]
      %v204 = vld [vmem:[%s191 + $0x20] sm:$0xff]
      %v205 = vld [vmem:[%s191 + $0x28] sm:$0xff]
      %v206 = vld [vmem:[%s191 + $0x30] sm:$0xff]
      %v207 = vld [vmem:[%s191 + $0x38] sm:$0xff]
      %v208 = vld [vmem:[%s191 + $0x40] sm:$0xff]
      %v209 = vld [vmem:[%s191 + $0x48] sm:$0xff]
      %v210 = vld [vmem:[%s191 + $0x50] sm:$0xff]
      %v211 = vld [vmem:[%s191 + $0x58] sm:$0xff]
      %v212 = vld [vmem:[%s191 + $0x60] sm:$0xff]
      %v213 = vld [vmem:[%s191 + $0x68] sm:$0xff]
      %v214 = vld [vmem:[%s191 + $0x70] sm:$0xff]
      %v215 = vld [vmem:[%s191 + $0x78] sm:$0xff]
      %v216 = vld [vmem:[%s185] sm:$0xff]
      %v217 = vld [vmem:[%s185 + $0x8] sm:$0xff]
      %v218 = vld [vmem:[%s185 + $0x10] sm:$0xff]
      %v219 = vld [vmem:[%s185 + $0x18] sm:$0xff]
      %v220 = vld [vmem:[%s185 + $0x20] sm:$0xff]
      %v221 = vld [vmem:[%s185 + $0x28] sm:$0xff]
      %v222 = vld [vmem:[%s185 + $0x30] sm:$0xff]
      %v223 = vld [vmem:[%s185 + $0x38] sm:$0xff]
      %v224 = vld [vmem:[%s185 + $0x40] sm:$0xff]
      %v225 = vld [vmem:[%s185 + $0x48] sm:$0xff]
      %v226 = vld [vmem:[%s185 + $0x50] sm:$0xff]
      %v227 = vld [vmem:[%s185 + $0x58] sm:$0xff]
      %v228 = vld [vmem:[%s185 + $0x60] sm:$0xff]
      %v229 = vld [vmem:[%s185 + $0x68] sm:$0xff]
      %v230 = vld [vmem:[%s185 + $0x70] sm:$0xff]
      %v231 = vld [vmem:[%s185 + $0x78] sm:$0xff]
      %v232 = vunpack.c.l.bf16 %v216
      %v233 = vunpack.c.h.bf16 %v216
      %v234 = vunpack.c.l.bf16 %v217
      %v235 = vunpack.c.h.bf16 %v217
      %v236 = vunpack.c.l.bf16 %v218
      %v237 = vunpack.c.h.bf16 %v218
      %v238 = vunpack.c.l.bf16 %v219
      %v239 = vunpack.c.h.bf16 %v219
      %v240 = vunpack.c.l.bf16 %v220
      %v241 = vunpack.c.h.bf16 %v220
      %v242 = vunpack.c.l.bf16 %v221
      %v243 = vunpack.c.h.bf16 %v221
      %v244 = vunpack.c.l.bf16 %v222
      %v245 = vunpack.c.h.bf16 %v222
      %v246 = vunpack.c.l.bf16 %v223
      %v247 = vunpack.c.h.bf16 %v223
      %v248 = vunpack.c.l.bf16 %v224
      %v249 = vunpack.c.h.bf16 %v224
      %v250 = vunpack.c.l.bf16 %v225
      %v251 = vunpack.c.h.bf16 %v225
      %v252 = vunpack.c.l.bf16 %v226
      %v253 = vunpack.c.h.bf16 %v226
      %v254 = vunpack.c.l.bf16 %v227
      %v255 = vunpack.c.h.bf16 %v227
      %v256 = vunpack.c.l.bf16 %v228
      %v257 = vunpack.c.h.bf16 %v228
      %v258 = vunpack.c.l.bf16 %v229
      %v259 = vunpack.c.h.bf16 %v229
      %v260 = vunpack.c.l.bf16 %v230
      %v261 = vunpack.c.h.bf16 %v230
      %v262 = vunpack.c.l.bf16 %v231
      %v263 = vunpack.c.h.bf16 %v231
      %v264 = vld [vmem:[%s1] sm:$0xff]
      %v265 = vld [vmem:[%s1 + $0x8] sm:$0xff]
      %v266 = vld [vmem:[%s1 + $0x10] sm:$0xff]
      %v267 = vld [vmem:[%s1 + $0x18] sm:$0xff]
      %v268 = vld [vmem:[%s1 + $0x20] sm:$0xff]
      %v269 = vld [vmem:[%s1 + $0x28] sm:$0xff]
      %v270 = vld [vmem:[%s1 + $0x30] sm:$0xff]
      %v271 = vld [vmem:[%s1 + $0x38] sm:$0xff]
      %v272 = vld [vmem:[%s1 + $0x40] sm:$0xff]
      %v273 = vld [vmem:[%s1 + $0x48] sm:$0xff]
      %v274 = vld [vmem:[%s1 + $0x50] sm:$0xff]
      %v275 = vld [vmem:[%s1 + $0x58] sm:$0xff]
      %v276 = vld [vmem:[%s1 + $0x60] sm:$0xff]
      %v277 = vld [vmem:[%s1 + $0x68] sm:$0xff]
      %v278 = vld [vmem:[%s1 + $0x70] sm:$0xff]
      %v279 = vld [vmem:[%s1 + $0x78] sm:$0xff]
      %v280 = vld [vmem:[%s1 + $0x80] sm:$0xff]
      %v281 = vld [vmem:[%s1 + $0x88] sm:$0xff]
      %v282 = vld [vmem:[%s1 + $0x90] sm:$0xff]
      %v283 = vld [vmem:[%s1 + $0x98] sm:$0xff]
      %v284 = vld [vmem:[%s1 + $0xa0] sm:$0xff]
      %v285 = vld [vmem:[%s1 + $0xa8] sm:$0xff]
      %v286 = vld [vmem:[%s1 + $0xb0] sm:$0xff]
      %v287 = vld [vmem:[%s1 + $0xb8] sm:$0xff]
      %v288 = vld [vmem:[%s1 + $0xc0] sm:$0xff]
      %v289 = vld [vmem:[%s1 + $0xc8] sm:$0xff]
      %v290 = vld [vmem:[%s1 + $0xd0] sm:$0xff]
      %v291 = vld [vmem:[%s1 + $0xd8] sm:$0xff]
      %v292 = vld [vmem:[%s1 + $0xe0] sm:$0xff]
      %v293 = vld [vmem:[%s1 + $0xe8] sm:$0xff]
      %v294 = vld [vmem:[%s1 + $0xf0] sm:$0xff]
      %v295 = vld [vmem:[%s1 + $0xf8] sm:$0xff]
      %s296 = scalar_lea.vmem %s1, %s199
      %v297 = vld [vmem:[%s296] sm:$0xff]
      %v298 = vld [vmem:[%s296 + $0x8] sm:$0xff]
      %v299 = vld [vmem:[%s296 + $0x10] sm:$0xff]
      %v300 = vld [vmem:[%s296 + $0x18] sm:$0xff]
      %v301 = vld [vmem:[%s296 + $0x20] sm:$0xff]
      %v302 = vld [vmem:[%s296 + $0x28] sm:$0xff]
      %v303 = vld [vmem:[%s296 + $0x30] sm:$0xff]
      %v304 = vld [vmem:[%s296 + $0x38] sm:$0xff]
      %v305 = vld [vmem:[%s296 + $0x40] sm:$0xff]
      %v306 = vld [vmem:[%s296 + $0x48] sm:$0xff]
      %v307 = vld [vmem:[%s296 + $0x50] sm:$0xff]
      %v308 = vld [vmem:[%s296 + $0x58] sm:$0xff]
      %v309 = vld [vmem:[%s296 + $0x60] sm:$0xff]
      %v310 = vld [vmem:[%s296 + $0x68] sm:$0xff]
      %v311 = vld [vmem:[%s296 + $0x70] sm:$0xff]
      %v312 = vld [vmem:[%s296 + $0x78] sm:$0xff]
      %313 = vmatpush.msra.mxu0 %v279
      %314 = vmatpush.msra.mxu0 %v278
      %315 = vmatpush.msra.mxu0 %v277
      %316 = vmatpush.msra.mxu0 %v276
      %317 = vmatpush.msra.mxu0 %v275
      %318 = vmatpush.msra.mxu0 %v274
      %319 = vmatpush.msra.mxu0 %v273
      %320 = vmatpush.msra.mxu0 %v272
      %321 = vmatpush.msra.mxu0 %v271
      %322 = vmatpush.msra.mxu0 %v270
      %323 = vmatpush.msra.mxu0 %v269
      %324 = vmatpush.msra.mxu0 %v268
      %325 = vmatpush.msra.mxu0 %v267
      %326 = vmatpush.msra.mxu0 %v266
      %327 = vmatpush.msra.mxu0 %v265
      %328 = vmatpush.msra.mxu0 %v264
      %329 = vmatmul.f32.gmra.mxu0 %v232
      %v330 = vpop.f32.mrf.mxu0
      %v331 = vadd.f32 %v297, %v330
      %332 = vmatmul.f32.gmra.mxu0 %v234
      %v333 = vpop.f32.mrf.mxu0
      %v334 = vadd.f32 %v298, %v333
      %335 = vmatmul.f32.gmra.mxu0 %v236
      %v336 = vpop.f32.mrf.mxu0
      %v337 = vadd.f32 %v299, %v336
      %338 = vmatmul.f32.gmra.mxu0 %v238
      %v339 = vpop.f32.mrf.mxu0
      %v340 = vadd.f32 %v300, %v339
      %341 = vmatmul.f32.gmra.mxu0 %v240
      %v342 = vpop.f32.mrf.mxu0
      %v343 = vadd.f32 %v301, %v342
      %344 = vmatmul.f32.gmra.mxu0 %v242
      %v345 = vpop.f32.mrf.mxu0
      %v346 = vadd.f32 %v302, %v345
      %347 = vmatmul.f32.gmra.mxu0 %v244
      %v348 = vpop.f32.mrf.mxu0
      %v349 = vadd.f32 %v303, %v348
      %350 = vmatmul.f32.gmra.mxu0 %v246
      %v351 = vpop.f32.mrf.mxu0
      %v352 = vadd.f32 %v304, %v351
      %353 = vmatmul.f32.gmra.mxu0 %v248
      %v354 = vpop.f32.mrf.mxu0
      %v355 = vadd.f32 %v305, %v354
      %356 = vmatmul.f32.gmra.mxu0 %v250
      %v357 = vpop.f32.mrf.mxu0
      %v358 = vadd.f32 %v306, %v357
      %359 = vmatmul.f32.gmra.mxu0 %v252
      %v360 = vpop.f32.mrf.mxu0
      %v361 = vadd.f32 %v307, %v360
      %362 = vmatmul.f32.gmra.mxu0 %v254
      %v363 = vpop.f32.mrf.mxu0
      %v364 = vadd.f32 %v308, %v363
      %365 = vmatmul.f32.gmra.mxu0 %v256
      %v366 = vpop.f32.mrf.mxu0
      %v367 = vadd.f32 %v309, %v366
      %368 = vmatmul.f32.gmra.mxu0 %v258
      %v369 = vpop.f32.mrf.mxu0
      %v370 = vadd.f32 %v310, %v369
      %371 = vmatmul.f32.gmra.mxu0 %v260
      %v372 = vpop.f32.mrf.mxu0
      %v373 = vadd.f32 %v311, %v372
      %374 = vmatmul.f32.gmra.mxu0 %v262
      %v375 = vpop.f32.mrf.mxu0
      %v376 = vadd.f32 %v312, %v375
      %377 = vdwg.mxu0
      %378 = vmatpush.msra.mxu0 %v295
      %379 = vmatpush.msra.mxu0 %v294
      %380 = vmatpush.msra.mxu0 %v293
      %381 = vmatpush.msra.mxu0 %v292
      %382 = vmatpush.msra.mxu0 %v291
      %383 = vmatpush.msra.mxu0 %v290
      %384 = vmatpush.msra.mxu0 %v289
      %385 = vmatpush.msra.mxu0 %v288
      %386 = vmatpush.msra.mxu0 %v287
      %387 = vmatpush.msra.mxu0 %v286
      %388 = vmatpush.msra.mxu0 %v285
      %389 = vmatpush.msra.mxu0 %v284
      %390 = vmatpush.msra.mxu0 %v283
      %391 = vmatpush.msra.mxu0 %v282
      %392 = vmatpush.msra.mxu0 %v281
      %393 = vmatpush.msra.mxu0 %v280
      %394 = vmatmul.f32.gmra.mxu0 %v233
      %v395 = vpop.f32.mrf.mxu0
      %v396 = vadd.f32 %v331, %v395
      %397 = vmatmul.f32.gmra.mxu0 %v235
      %v398 = vpop.f32.mrf.mxu0
      %v399 = vadd.f32 %v334, %v398
      %400 = vmatmul.f32.gmra.mxu0 %v237
      %v401 = vpop.f32.mrf.mxu0
      %v402 = vadd.f32 %v337, %v401
      %403 = vmatmul.f32.gmra.mxu0 %v239
      %v404 = vpop.f32.mrf.mxu0
      %v405 = vadd.f32 %v340, %v404
      %406 = vmatmul.f32.gmra.mxu0 %v241
      %v407 = vpop.f32.mrf.mxu0
      %v408 = vadd.f32 %v343, %v407
      %409 = vmatmul.f32.gmra.mxu0 %v243
      %v410 = vpop.f32.mrf.mxu0
      %v411 = vadd.f32 %v346, %v410
      %412 = vmatmul.f32.gmra.mxu0 %v245
      %v413 = vpop.f32.mrf.mxu0
      %v414 = vadd.f32 %v349, %v413
      %415 = vmatmul.f32.gmra.mxu0 %v247
      %v416 = vpop.f32.mrf.mxu0
      %v417 = vadd.f32 %v352, %v416
      %418 = vmatmul.f32.gmra.mxu0 %v249
      %v419 = vpop.f32.mrf.mxu0
      %v420 = vadd.f32 %v355, %v419
      %421 = vmatmul.f32.gmra.mxu0 %v251
      %v422 = vpop.f32.mrf.mxu0
      %v423 = vadd.f32 %v358, %v422
      %424 = vmatmul.f32.gmra.mxu0 %v253
      %v425 = vpop.f32.mrf.mxu0
      %v426 = vadd.f32 %v361, %v425
      %427 = vmatmul.f32.gmra.mxu0 %v255
      %v428 = vpop.f32.mrf.mxu0
      %v429 = vadd.f32 %v364, %v428
      %430 = vmatmul.f32.gmra.mxu0 %v257
      %v431 = vpop.f32.mrf.mxu0
      %v432 = vadd.f32 %v367, %v431
      %433 = vmatmul.f32.gmra.mxu0 %v259
      %v434 = vpop.f32.mrf.mxu0
      %v435 = vadd.f32 %v370, %v434
      %436 = vmatmul.f32.gmra.mxu0 %v261
      %v437 = vpop.f32.mrf.mxu0
      %v438 = vadd.f32 %v373, %v437
      %439 = vmatmul.f32.gmra.mxu0 %v263
      %v440 = vpop.f32.mrf.mxu0
      %v441 = vadd.f32 %v376, %v440
      %442 = vdwg.mxu0
      %444 = vset.pattern.permute.xlu0 0
      %445 = vperm.xlu0 %444, %v200
      %v446 = vpop.permute.xlu0 %445
      %449 = vset.pattern.permute.xlu0 0
      %450 = vperm.xlu0 %449, %v201
      %v451 = vpop.permute.xlu0 %450
      %454 = vset.pattern.permute.xlu0 0
      %455 = vperm.xlu0 %454, %v202
      %v456 = vpop.permute.xlu0 %455
      %459 = vset.pattern.permute.xlu0 0
      %460 = vperm.xlu0 %459, %v203
      %v461 = vpop.permute.xlu0 %460
      %464 = vset.pattern.permute.xlu0 0
      %465 = vperm.xlu0 %464, %v204
      %v466 = vpop.permute.xlu0 %465
      %469 = vset.pattern.permute.xlu0 0
      %470 = vperm.xlu0 %469, %v205
      %v471 = vpop.permute.xlu0 %470
      %474 = vset.pattern.permute.xlu0 0
      %475 = vperm.xlu0 %474, %v206
      %v476 = vpop.permute.xlu0 %475
      %479 = vset.pattern.permute.xlu0 0
      %480 = vperm.xlu0 %479, %v207
      %v481 = vpop.permute.xlu0 %480
      %484 = vset.pattern.permute.xlu0 0
      %485 = vperm.xlu0 %484, %v208
      %v486 = vpop.permute.xlu0 %485
      %489 = vset.pattern.permute.xlu0 0
      %490 = vperm.xlu0 %489, %v209
      %v491 = vpop.permute.xlu0 %490
      %494 = vset.pattern.permute.xlu0 0
      %495 = vperm.xlu0 %494, %v210
      %v496 = vpop.permute.xlu0 %495
      %499 = vset.pattern.permute.xlu0 0
      %500 = vperm.xlu0 %499, %v211
      %v501 = vpop.permute.xlu0 %500
      %504 = vset.pattern.permute.xlu0 0
      %505 = vperm.xlu0 %504, %v212
      %v506 = vpop.permute.xlu0 %505
      %509 = vset.pattern.permute.xlu0 0
      %510 = vperm.xlu0 %509, %v213
      %v511 = vpop.permute.xlu0 %510
      %514 = vset.pattern.permute.xlu0 0
      %515 = vperm.xlu0 %514, %v214
      %v516 = vpop.permute.xlu0 %515
      %519 = vset.pattern.permute.xlu0 0
      %520 = vperm.xlu0 %519, %v215
      %v521 = vpop.permute.xlu0 %520
      %v523 = vmul.f32 %v446, %v396
      %v524 = vmul.f32 %v451, %v399
      %v525 = vmul.f32 %v456, %v402
      %v526 = vmul.f32 %v461, %v405
      %v527 = vmul.f32 %v466, %v408
      %v528 = vmul.f32 %v471, %v411
      %v529 = vmul.f32 %v476, %v414
      %v530 = vmul.f32 %v481, %v417
      %v531 = vmul.f32 %v486, %v420
      %v532 = vmul.f32 %v491, %v423
      %v533 = vmul.f32 %v496, %v426
      %v534 = vmul.f32 %v501, %v429
      %v535 = vmul.f32 %v506, %v432
      %v536 = vmul.f32 %v511, %v435
      %v537 = vmul.f32 %v516, %v438
      %v538 = vmul.f32 %v521, %v441
      %vm539 = vcmask 130048
      %540 = vst.msk [vmem:[%s197] sm:$0xff] %vm539, %v523
      %541 = vst.msk [vmem:[%s197 + $0x8] sm:$0xff] %vm539, %v524
      %542 = vst.msk [vmem:[%s197 + $0x10] sm:$0xff] %vm539, %v525
      %543 = vst.msk [vmem:[%s197 + $0x18] sm:$0xff] %vm539, %v526
      %544 = vst.msk [vmem:[%s197 + $0x20] sm:$0xff] %vm539, %v527
      %545 = vst.msk [vmem:[%s197 + $0x28] sm:$0xff] %vm539, %v528
      %546 = vst.msk [vmem:[%s197 + $0x30] sm:$0xff] %vm539, %v529
      %547 = vst.msk [vmem:[%s197 + $0x38] sm:$0xff] %vm539, %v530
      %548 = vst.msk [vmem:[%s197 + $0x40] sm:$0xff] %vm539, %v531
      %549 = vst.msk [vmem:[%s197 + $0x48] sm:$0xff] %vm539, %v532
      %550 = vst.msk [vmem:[%s197 + $0x50] sm:$0xff] %vm539, %v533
      %551 = vst.msk [vmem:[%s197 + $0x58] sm:$0xff] %vm539, %v534
      %552 = vst.msk [vmem:[%s197 + $0x60] sm:$0xff] %vm539, %v535
      %553 = vst.msk [vmem:[%s197 + $0x68] sm:$0xff] %vm539, %v536
      %554 = vst.msk [vmem:[%s197 + $0x70] sm:$0xff] %vm539, %v537
      %555 = vst.msk [vmem:[%s197 + $0x78] sm:$0xff] %vm539, %v538
      %s556 = smul.u32 16, %s14
      %p557 = scmp.lt.s32.totalorder %s556, 31
      %s558 = scalar_select %p557, %s556, 31
      %s559 = smul.addr %s558, 8
      %s560 = scalar_lea.vmem %s3, %s559
      // Predicated region
      $region33: #{surrogate_gnn_forward.3} parent=31 // pred_check
        %p561 = pneg %p105
      $region34: #{surrogate_gnn_forward.3} parent=31 // pred_check_branch
        %563 = sbr.rel (%p561) target = $region36
      $region35: #{surrogate_gnn_forward.3} parent=31 // pred_region
        %s564 = smul.u32 16, %s14
      $region36: #{surrogate_gnn_forward.3} parent=31 // pred_fallthru
        _
    $region32: #{surrogate_gnn_forward.3} parent=5 // pred_fallthru
      _
    %p565 = scmp.le.s32.totalorder 2, %s9
    // Predicated region
    $region37: #{surrogate_gnn_forward.3} parent=5 // pred_check
      %p566 = pneg %p565
    $region38: #{surrogate_gnn_forward.3} parent=5 // pred_check_branch
      %568 = sbr.rel (%p566) target = $region40
    $region39: #{surrogate_gnn_forward.3} parent=5 // pred_region
      %s569 = ssub.s32 %s9, 2
      // Predicated region
      $region41: #{surrogate_gnn_forward.3} parent=39 // pred_check
        %p570 = pneg %p111
      $region42: #{surrogate_gnn_forward.3} parent=39 // pred_check_branch
        %572 = sbr.rel (%p570) target = $region44
      $region43: #{surrogate_gnn_forward.3} parent=39 // pred_region
        %s573 = smul.u32 16, %s15
        %p574 = scmp.lt.s32.totalorder %s573, 31
        %s575 = scalar_select %p574, %s573, 31
        %s576 = smul.addr %s575, 8
        %s577 = scalar_lea.vmem %s3, %s576
      $region44: #{surrogate_gnn_forward.3} parent=39 // pred_fallthru
        _
    $region40: #{surrogate_gnn_forward.3} parent=5 // pred_fallthru
      _
  $region6: #{surrogate_gnn_forward.3} parent=0 // loop_footer
    %s13 = sadd.s32 1, %s9
  $region7: #{surrogate_gnn_forward.3} parent=0 // loop_footer_branch
    %8 = sbr.rel target = $region3
  $region8: #{surrogate_gnn_forward.3} parent=0 // loop_exit
    _

// kernel: custom-call.8
$region0: #{custom-call.8}
  %s0 = inlined_call_operand.vmem [shape: f32[17,17], index: 0, kind: input, shape index: {}]
  %s1 = inlined_call_operand.vmem [shape: f32[17,17], index: 1, kind: output, shape index: {0}]
  %s2 = inlined_call_operand.hbm [shape: s32[17], index: 2, kind: output, shape index: {1}]
  %s3 = inlined_call_operand.vmem [shape: s32[17], index: 3, kind: output, shape index: {2}]
  %4 = xla_tuple %s1, %s2, %s3
  $region1: #{custom-call.8} parent=0
    #allocation0 [shape = 'u8[12288]{0}', space=vmem, size = 0x3000, scoped, tag = 'operand span for operand 0']
    #allocation1 [shape = 'u8[12288]{0}', space=vmem, size = 0x3000, scoped, tag = 'operand span for operand 1']
    #allocation2 [shape = 'u8[4096]{0}', space=vmem, size = 0x1000, scoped, tag = 'operand span for operand 2']
    #allocation3 [shape = 'u8[512]{0}', space=vmem, size = 0x400, scoped, tag = 'packed  for operand 2']
    #allocation4 [shape = 's32[1]{0}', space=sflag, size = 0x4, scoped, tag = 'scoped memory for custom-call.8']
    #allocation5 [shape = 'u8[4096]{0}', space=vmem, size = 0x1000, scoped, tag = 'operand span for operand 3']
    #allocation6 [shape = 'u8[512]{0}', space=vmem, size = 0x400, scoped, tag = 'packed  for operand 3']
    #allocation7 [shape = 's32[17,128]{1,0}', space=vmem, size = 0x3000, scoped, tag = 'scratch for permutations']
    %5 = vsyncpa [#allocation4], 0
    // Predicated region
    $region2: #{custom-call.8} parent=1 // pred_check
      _
    $region3: #{custom-call.8} parent=1 // pred_check_branch
      %7 = sbr.rel (0) target = $region5
    $region4: #{custom-call.8} parent=1 // pred_region
      %p9 = scmp.gt.s32.totalorder 3, 0
      // Predicated region
      $region6: #{custom-call.8} parent=4 // pred_check
        %p10 = pneg %p9
      $region7: #{custom-call.8} parent=4 // pred_check_branch
        %12 = sbr.rel (%p10) target = $region9
      $region8: #{custom-call.8} parent=4 // pred_region
        %s13 = ssub.s32 3, 1
        %s14 = smul.u32 %s13, 8
        %s15 = scalar_lea.vmem %s0, %s14
        %v16 = vld [vmem:[%s0] sm:$0xff]
        // While loop
        $region10: #{custom-call.8} parent=8 // loop_pre_header
          _
        $region11: #{custom-call.8} parent=8 // loop_header
          %s17 = sphi %s0, %s39
          %s18 = sphi [#allocation0], %s40
          %v19 = vphi %v16, %v41
          %s20 = ssub.s32 %s15, 64
          %p21 = scmp.gt.s32.totalorder %s17, %s20
        $region12: #{custom-call.8} parent=8 // loop_header_branch
          %23 = sbr.rel (%p21) target = $region16
        $region13: #{custom-call.8} parent=8 // loop_body
          %24 = vst [vmem:[%s18] sm:$0xff] %v19
          %v25 = vld [vmem:[%s17 + $0x8] sm:$0xff]
          %26 = vst [vmem:[%s18 + $0x8] sm:$0xff] %v25
          %v27 = vld [vmem:[%s17 + $0x10] sm:$0xff]
          %28 = vst [vmem:[%s18 + $0x10] sm:$0xff] %v27
          %v29 = vld [vmem:[%s17 + $0x18] sm:$0xff]
          %30 = vst [vmem:[%s18 + $0x18] sm:$0xff] %v29
          %v31 = vld [vmem:[%s17 + $0x20] sm:$0xff]
          %32 = vst [vmem:[%s18 + $0x20] sm:$0xff] %v31
          %v33 = vld [vmem:[%s17 + $0x28] sm:$0xff]
          %34 = vst [vmem:[%s18 + $0x28] sm:$0xff] %v33
          %v35 = vld [vmem:[%s17 + $0x30] sm:$0xff]
          %36 = vst [vmem:[%s18 + $0x30] sm:$0xff] %v35
          %v37 = vld [vmem:[%s17 + $0x38] sm:$0xff]
          %38 = vst [vmem:[%s18 + $0x38] sm:$0xff] %v37
        $region14: #{custom-call.8} parent=8 // loop_footer
          %s39 = scalar_lea.vmem %s17, 64
          %s40 = scalar_lea.vmem %s18, 64
          %v41 = vld [vmem:[%s17 + $0x40] sm:$0xff]
        $region15: #{custom-call.8} parent=8 // loop_footer_branch
          %42 = sbr.rel target = $region11
        $region16: #{custom-call.8} parent=8 // loop_exit
          _
        // While loop
        $region17: #{custom-call.8} parent=8 // loop_pre_header
          _
        $region18: #{custom-call.8} parent=8 // loop_header
          %s43 = sphi %s17, %s51
          %s44 = sphi %s18, %s52
          %v45 = vphi %v19, %v45
          %p46 = scmp.gt.s32.totalorder %s43, %s15
        $region19: #{custom-call.8} parent=8 // loop_header_branch
          %48 = sbr.rel (%p46) target = $region23
        $region20: #{custom-call.8} parent=8 // loop_body
          %v49 = vld [vmem:[%s43] sm:$0xff]
          %50 = vst [vmem:[%s44] sm:$0xff] %v49
        $region21: #{custom-call.8} parent=8 // loop_footer
          %s51 = scalar_lea.vmem %s43, 8
          %s52 = scalar_lea.vmem %s44, 8
        $region22: #{custom-call.8} parent=8 // loop_footer_branch
          %53 = sbr.rel target = $region18
        $region23: #{custom-call.8} parent=8 // loop_exit
          _
      $region9: #{custom-call.8} parent=4 // pred_fallthru
        _
      %s55 = ssub.s32 1, 1
      %s56 = smul.u32 3, 8
      %s57 = scalar_lea.vmem [#allocation0], %s56
      %s58 = smul.u32 3, 8
      %s59 = scalar_lea.vmem %s0, %s58
      %v60 = vld [vmem:[%s59] sm:%s55]
      %61 = vst [vmem:[%s57] sm:%s55] %v60
    $region5: #{custom-call.8} parent=1 // pred_fallthru
      _
    %v62 = vld [vmem:[#allocation0] sm:$0xff]
    %63 = vst [vmem:[#allocation1] sm:$0xff] %v62
    %s64 = scalar_lea.vmem [#allocation1], 8
    %s65 = scalar_lea.vmem [#allocation0], 8
    %v66 = vld [vmem:[%s65] sm:$0xff]
    %67 = vst [vmem:[%s64] sm:$0xff] %v66
    %s68 = scalar_lea.vmem [#allocation1], 16
    %s69 = scalar_lea.vmem [#allocation0], 16
    %v70 = vld [vmem:[%s69] sm:$0xff]
    %71 = vst [vmem:[%s68] sm:$0xff] %v70
    %72 = vst [vmem:[#allocation2] sm:$0x1] 0
    %v73 = vlaneseq
    %v74 = vshrl.u32 %v73, 7
    %v75 = vmov %v74
    loop: start=0, step=1, limit=3
    $region24: #{custom-call.8} parent=1 // loop_pre_header
      _
    $region25: #{custom-call.8} parent=1 // loop_header
      %s77 = sphi 0, %s81
      %p78 = scmp.ge.s32.totalorder %s77, 3
    $region26: #{custom-call.8} parent=1 // loop_header_branch
      %80 = sbr.rel (%p78) target = $region30
    $region27: #{custom-call.8} parent=1 // loop_body
      %s82 = smul.addr %s77, 8
      %s83 = scalar_lea.vmem [#allocation7], %s82
      %s84 = smul.u32 %s77, 8
      %v85 = vstv %s84
      %v86 = vadd.s32 %v75, %v85
      %87 = vst [vmem:[%s83] sm:$0xff] %v86
    $region28: #{custom-call.8} parent=1 // loop_footer
      %s81 = sadd.s32 1, %s77
    $region29: #{custom-call.8} parent=1 // loop_footer_branch
      %76 = sbr.rel target = $region25
    $region30: #{custom-call.8} parent=1 // loop_exit
      _
    loop: start=0, step=1, limit=17
    $region31: #{custom-call.8} parent=1 // loop_pre_header
      _
    $region32: #{custom-call.8} parent=1 // loop_header
      %s89 = sphi 0, %s93
      %p90 = scmp.ge.s32.totalorder %s89, 17
    $region33: #{custom-call.8} parent=1 // loop_header_branch
      %92 = sbr.rel (%p90) target = $region37
    $region34: #{custom-call.8} parent=1 // loop_body
      %v94 = vstv %s89
      %v95 = vlaneseq
      %v96 = vshrl.u32 %v95, 7
      %v97 = vmov %v96
      %v98 = vld [vmem:[#allocation1] sm:$0xff]
      %v99 = vand.u32 2147483647, %v98
      %v101 = vstv %s89
      %vm102 = vcmp.ge.s32.totalorder %v97, %v101
      %vm103 = vcmp.lt.s32.totalorder %v97, 17
      %vm104 = vmand %vm102, %vm103
      %vm105 = vcmp.lt.f32.partialorder -inf, %v99
      %vm106 = vmand %vm104, %vm105
      %v107 = vsel %vm106, %v97, %v94
      %v108 = vsel %vm106, %v99, -inf
      %s109 = scalar_lea.vmem [#allocation1], 8
      %v110 = vld [vmem:[%s109] sm:$0xff]
      %v111 = vand.u32 2147483647, %v110
      %v112 = vadd.s32 %v97, 8
      %v113 = vstv %s89
      %vm114 = vcmp.ge.s32.totalorder %v112, %v113
      %vm115 = vcmp.lt.s32.totalorder %v112, 17
      %vm116 = vmand %vm114, %vm115
      %vm117 = vcmp.lt.f32.partialorder %v108, %v111
      %vm118 = vmand %vm116, %vm117
      %v119 = vsel %vm118, %v112, %v107
      %v120 = vsel %vm118, %v111, %v108
      %s121 = scalar_lea.vmem [#allocation1], 16
      %v122 = vld [vmem:[%s121] sm:$0xff]
      %v123 = vand.u32 2147483647, %v122
      %v124 = vadd.s32 %v97, 16
      %v125 = vstv %s89
      %vm126 = vcmp.ge.s32.totalorder %v124, %v125
      %vm127 = vcmp.lt.s32.totalorder %v124, 17
      %vm128 = vmand %vm126, %vm127
      %vm129 = vcmp.lt.f32.partialorder %v120, %v123
      %vm130 = vmand %vm128, %vm129
      %v131 = vsel %vm130, %v124, %v119
      %v132 = vsel %vm130, %v123, %v120
      %v133 = vrot.slane %v132, 1
      %v134 = vrot.slane %v131, 1
      %vm135 = vcmp.ge.f32.partialorder %v133, %v132
      %v136 = vsel %vm135, %v133, %v132
      %v137 = vsel %vm135, %v134, %v131
      %v138 = vrot.slane %v133, 1
      %v139 = vrot.slane %v134, 1
      %vm140 = vcmp.ge.f32.partialorder %v138, %v136
      %v141 = vsel %vm140, %v138, %v136
      %v142 = vsel %vm140, %v139, %v137
      %v143 = vrot.slane %v138, 1
      %v144 = vrot.slane %v139, 1
      %vm145 = vcmp.ge.f32.partialorder %v143, %v141
      %v146 = vsel %vm145, %v143, %v141
      %v147 = vsel %vm145, %v144, %v142
      %v148 = vrot.slane %v143, 1
      %v149 = vrot.slane %v144, 1
      %vm150 = vcmp.ge.f32.partialorder %v148, %v146
      %v151 = vsel %vm150, %v148, %v146
      %v152 = vsel %vm150, %v149, %v147
      %v153 = vrot.slane %v148, 1
      %v154 = vrot.slane %v149, 1
      %vm155 = vcmp.ge.f32.partialorder %v153, %v151
      %v156 = vsel %vm155, %v153, %v151
      %v157 = vsel %vm155, %v154, %v152
      %v158 = vrot.slane %v153, 1
      %v159 = vrot.slane %v154, 1
      %vm160 = vcmp.ge.f32.partialorder %v158, %v156
      %v161 = vsel %vm160, %v158, %v156
      %v162 = vsel %vm160, %v159, %v157
      %v163 = vrot.slane %v158, 1
      %v164 = vrot.slane %v159, 1
      %vm165 = vcmp.ge.f32.partialorder %v163, %v161
      %v166 = vsel %vm165, %v163, %v161
      %v167 = vsel %vm165, %v164, %v162
      %s168 = ssub.s32 128, %s89
      %169 = vrot.lane.b32.xlu0 %v167, %s168
      %v170 = vpop.permute.xlu0 %169
      %s171 = vtos %v170
      %v172 = vstv %s89
      %v173 = vlaneseq
      %v174 = vand.u32 %v173, 127
      %vm175 = vcmp.eq.s32.totalorder %v174, %v172
      %v176 = vstv %s171
      %v177 = vld [vmem:[#allocation2] ss:$0 sm:$0xff]
      %v178 = vsel %vm175, %v176, %v177
      %179 = vst [vmem:[#allocation2] sm:$0x1] %v178
      %s180 = scalar_lea.vmem [#allocation1], %s89
      %s181 = scalar_lea.vmem [#allocation1], %s171
      %v182 = vld [vmem:[%s180] ss:$0 sm:$0xff]
      %v183 = vld [vmem:[%s181] ss:$0 sm:$0xff]
      %184 = vst [vmem:[%s181] sm:$0x1] %v182
      %185 = vst [vmem:[%s180] sm:$0x1] %v183
      %s186 = scalar_lea.vmem [#allocation7], %s89
      %s187 = scalar_lea.vmem [#allocation7], %s171
      %v188 = vld [vmem:[%s186] ss:$0 sm:$0xff]
      %v189 = vld [vmem:[%s187] ss:$0 sm:$0xff]
      %190 = vst [vmem:[%s187] sm:$0x1] %v188
      %191 = vst [vmem:[%s186] sm:$0x1] %v189
      %vm192 = vcmp.ne.f32.partialorder %v183, 0.0
      %vm193 = vmand %vm175, %vm192
      %v194 = vsel %vm193, %v183, 1.0
      %v195 = vlaneseq
      %v196 = vand.u32 %v195, 127
      %v197 = vstv %s89
      %vm198 = vcmp.gt.s32.totalorder %v196, %v197
      %v199 = vsel %vm198, %v183, 0.0
      %v200 = vlaneseq
      %v201 = vshrl.u32 %v200, 7
      %v202 = vmov %v201
      %v203 = vld [vmem:[#allocation1] sm:$0xff]
      %v205 = vstv %s89
      %vm206 = vcmp.gt.s32.totalorder %v202, %v205
      %v207 = vsel %vm206, %v194, 1.0
      %v208 = vrcp.pop %v207
      %v209 = vmul.f32 %v207, %v208
      %v210 = vsub.f32 1.0, %v209
      %v211 = vmul.f32 %v208, %v210
      %v212 = vadd.f32 %v208, %v211
      %vm213 = vweird.f32 %v207
      %vm214 = vweird.f32 %v208
      %vm215 = vmor %vm213, %vm214
      %v216 = vsel %vm215, %v208, %v212
      %v217 = vand.u32 2147483647, %v207
      %vm218 = vcmp.eq.f32.partialorder %v217, 8.507059e+37
      %v219 = vand.u32 %v207, 2147483648
      %v220 = vor.u32 1.1754944e-38, %v219
      %v221 = vsel %vm218, %v220, %v216
      %v222 = vmul.f32 %v203, %v221
      %vm223 = vmand %vm206, %vm175
      %v224 = vsel %vm223, %v222, 0.0
      %225 = vadd.xlane.f32.xlu0 %v224
      %v226 = vpop.xlane.xlu0 %225
      %v227 = vmul.f32 %v226, %v199
      %v228 = vsub.f32 %v222, %v227
      %229 = vst [vmem:[#allocation1] sm:$0xff] %v228
      %s230 = scalar_lea.vmem [#allocation1], 8
      %v231 = vld [vmem:[%s230] sm:$0xff]
      %v232 = vadd.s32 %v202, 8
      %v233 = vstv %s89
      %vm234 = vcmp.gt.s32.totalorder %v232, %v233
      %v235 = vsel %vm234, %v194, 1.0
      %v236 = vrcp.pop %v235
      %v237 = vmul.f32 %v235, %v236
      %v238 = vsub.f32 1.0, %v237
      %v239 = vmul.f32 %v236, %v238
      %v240 = vadd.f32 %v236, %v239
      %vm241 = vweird.f32 %v235
      %vm242 = vweird.f32 %v236
      %vm243 = vmor %vm241, %vm242
      %v244 = vsel %vm243, %v236, %v240
      %v245 = vand.u32 2147483647, %v235
      %vm246 = vcmp.eq.f32.partialorder %v245, 8.507059e+37
      %v247 = vand.u32 %v235, 2147483648
      %v248 = vor.u32 1.1754944e-38, %v247
      %v249 = vsel %vm246, %v248, %v244
      %v250 = vmul.f32 %v231, %v249
      %vm251 = vmand %vm234, %vm175
      %v252 = vsel %vm251, %v250, 0.0
      %253 = vadd.xlane.f32.xlu0 %v252
      %v254 = vpop.xlane.xlu0 %253
      %v255 = vmul.f32 %v254, %v199
      %v256 = vsub.f32 %v250, %v255
      %257 = vst [vmem:[%s230] sm:$0xff] %v256
      %s258 = scalar_lea.vmem [#allocation1], 16
      %v259 = vld [vmem:[%s258] sm:$0xff]
      %v260 = vadd.s32 %v202, 16
      %v261 = vstv %s89
      %vm262 = vcmp.gt.s32.totalorder %v260, %v261
      %v263 = vsel %vm262, %v194, 1.0
      %v264 = vrcp.pop %v263
      %v265 = vmul.f32 %v263, %v264
      %v266 = vsub.f32 1.0, %v265
      %v267 = vmul.f32 %v264, %v266
      %v268 = vadd.f32 %v264, %v267
      %vm269 = vweird.f32 %v263
      %vm270 = vweird.f32 %v264
      %vm271 = vmor %vm269, %vm270
      %v272 = vsel %vm271, %v264, %v268
      %v273 = vand.u32 2147483647, %v263
      %vm274 = vcmp.eq.f32.partialorder %v273, 8.507059e+37
      %v275 = vand.u32 %v263, 2147483648
      %v276 = vor.u32 1.1754944e-38, %v275
      %v277 = vsel %vm274, %v276, %v272
      %v278 = vmul.f32 %v259, %v277
      %vm279 = vmand %vm262, %vm175
      %v280 = vsel %vm279, %v278, 0.0
      %281 = vadd.xlane.f32.xlu0 %v280
      %v282 = vpop.xlane.xlu0 %281
      %v283 = vmul.f32 %v282, %v199
      %v284 = vsub.f32 %v278, %v283
      %285 = vst [vmem:[%s258] sm:$0xff] %v284
    $region35: #{custom-call.8} parent=1 // loop_footer
      %s93 = sadd.s32 1, %s89
    $region36: #{custom-call.8} parent=1 // loop_footer_branch
      %88 = sbr.rel target = $region32
    $region37: #{custom-call.8} parent=1 // loop_exit
      _
    %v286 = vld [vmem:[#allocation7] sm:$0xff]
    %s287 = scalar_lea.vmem [#allocation7], 8
    %v288 = vld [vmem:[%s287] sm:$0xff]
    %s289 = scalar_lea.vmem [#allocation7], 16
    %v290 = vld [vmem:[%s289] sm:$0xff]
    %s291 = scalar_lea.vmem [#allocation7], 24
    %s292 = scalar_lea.vmem [#allocation7], 32
    %s293 = scalar_lea.vmem [#allocation7], 40
    %s294 = scalar_lea.vmem [#allocation7], 48
    %s295 = scalar_lea.vmem [#allocation7], 56
    %s296 = scalar_lea.vmem [#allocation7], 64
    %s297 = scalar_lea.vmem [#allocation7], 72
    %s298 = scalar_lea.vmem [#allocation7], 80
    %s299 = scalar_lea.vmem [#allocation7], 88
    %s300 = scalar_lea.vmem [#allocation7], 96
    %s301 = scalar_lea.vmem [#allocation7], 104
    %s302 = scalar_lea.vmem [#allocation7], 112
    %s303 = scalar_lea.vmem [#allocation7], 120
    %304 = vxpose.xlu0.b32.start [1/16] %v286, 128
    %305 = vxpose.xlu0.b32.cont [2/16] %v288, 128
    %306 = vxpose.xlu0.b32.cont [3/16] %v290, 128
    %307 = vxpose.xlu0.b32.cont [4/16] 0, 128
    %308 = vxpose.xlu0.b32.cont [5/16] 0, 128
    %309 = vxpose.xlu0.b32.cont [6/16] 0, 128
    %310 = vxpose.xlu0.b32.cont [7/16] 0, 128
    %311 = vxpose.xlu0.b32.cont [8/16] 0, 128
    %312 = vxpose.xlu0.b32.cont [9/16] 0, 128
    %313 = vxpose.xlu0.b32.cont [10/16] 0, 128
    %314 = vxpose.xlu0.b32.cont [11/16] 0, 128
    %315 = vxpose.xlu0.b32.cont [12/16] 0, 128
    %316 = vxpose.xlu0.b32.cont [13/16] 0, 128
    %317 = vxpose.xlu0.b32.cont [14/16] 0, 128
    %318 = vxpose.xlu0.b32.cont [15/16] 0, 128
    %319 = vxpose.xlu0.b32.end [16/16] 0, 128
    %v320 = vpop.trf.xlu0
    %v321 = vpop.trf.xlu0
    %v322 = vpop.trf.xlu0
    %v323 = vpop.trf.xlu0
    %v324 = vpop.trf.xlu0
    %v325 = vpop.trf.xlu0
    %v326 = vpop.trf.xlu0
    %v327 = vpop.trf.xlu0
    %v328 = vpop.trf.xlu0
    %v329 = vpop.trf.xlu0
    %v330 = vpop.trf.xlu0
    %v331 = vpop.trf.xlu0
    %v332 = vpop.trf.xlu0
    %v333 = vpop.trf.xlu0
    %v334 = vpop.trf.xlu0
    %v335 = vpop.trf.xlu0
    %336 = vst [vmem:[#allocation5] sm:$0x1] %v320
    %s338 = ssub.s32 2, 1
    %v339 = vld [vmem:[#allocation2] sm:%s338]
    %s341 = ssub.s32 2, 1
    %342 = vst [vmem:[#allocation3] sm:%s341] %v339
    %s344 = ssub.s32 2, 1
    %v345 = vld [vmem:[#allocation5] sm:%s344]
    %s347 = ssub.s32 2, 1
    %348 = vst [vmem:[#allocation6] sm:%s347] %v345
    // Predicated region
    $region38: #{custom-call.8} parent=1 // pred_check
      _
    $region39: #{custom-call.8} parent=1 // pred_check_branch
      %350 = sbr.rel (0) target = $region41
    $region40: #{custom-call.8} parent=1 // pred_region
      %p352 = scmp.gt.s32.totalorder 3, 0
      // Predicated region
      $region42: #{custom-call.8} parent=40 // pred_check
        %p353 = pneg %p352
      $region43: #{custom-call.8} parent=40 // pred_check_branch
        %355 = sbr.rel (%p353) target = $region45
      $region44: #{custom-call.8} parent=40 // pred_region
        %s356 = ssub.s32 3, 1
        %s357 = smul.u32 %s356, 8
        %s358 = scalar_lea.vmem [#allocation1], %s357
        %v359 = vld [vmem:[#allocation1] sm:$0xff]
        // While loop
        $region46: #{custom-call.8} parent=44 // loop_pre_header
          _
        $region47: #{custom-call.8} parent=44 // loop_header
          %s360 = sphi [#allocation1], %s382
          %s361 = sphi %s1, %s383
          %v362 = vphi %v359, %v384
          %s363 = ssub.s32 %s358, 64
          %p364 = scmp.gt.s32.totalorder %s360, %s363
        $region48: #{custom-call.8} parent=44 // loop_header_branch
          %366 = sbr.rel (%p364) target = $region52
        $region49: #{custom-call.8} parent=44 // loop_body
          %367 = vst [vmem:[%s361] sm:$0xff] %v362
          %v368 = vld [vmem:[%s360 + $0x8] sm:$0xff]
          %369 = vst [vmem:[%s361 + $0x8] sm:$0xff] %v368
          %v370 = vld [vmem:[%s360 + $0x10] sm:$0xff]
          %371 = vst [vmem:[%s361 + $0x10] sm:$0xff] %v370
          %v372 = vld [vmem:[%s360 + $0x18] sm:$0xff]
          %373 = vst [vmem:[%s361 + $0x18] sm:$0xff] %v372
          %v374 = vld [vmem:[%s360 + $0x20] sm:$0xff]
          %375 = vst [vmem:[%s361 + $0x20] sm:$0xff] %v374
          %v376 = vld [vmem:[%s360 + $0x28] sm:$0xff]
          %377 = vst [vmem:[%s361 + $0x28] sm:$0xff] %v376
          %v378 = vld [vmem:[%s360 + $0x30] sm:$0xff]
          %379 = vst [vmem:[%s361 + $0x30] sm:$0xff] %v378
          %v380 = vld [vmem:[%s360 + $0x38] sm:$0xff]
          %381 = vst [vmem:[%s361 + $0x38] sm:$0xff] %v380
        $region50: #{custom-call.8} parent=44 // loop_footer
          %s382 = scalar_lea.vmem %s360, 64
          %s383 = scalar_lea.vmem %s361, 64
          %v384 = vld [vmem:[%s360 + $0x40] sm:$0xff]
        $region51: #{custom-call.8} parent=44 // loop_footer_branch
          %385 = sbr.rel target = $region47
        $region52: #{custom-call.8} parent=44 // loop_exit
          _
        // While loop
        $region53: #{custom-call.8} parent=44 // loop_pre_header
          _
        $region54: #{custom-call.8} parent=44 // loop_header
          %s386 = sphi %s360, %s394
          %s387 = sphi %s361, %s395
          %v388 = vphi %v362, %v388
          %p389 = scmp.gt.s32.totalorder %s386, %s358
        $region55: #{custom-call.8} parent=44 // loop_header_branch
          %391 = sbr.rel (%p389) target = $region59
        $region56: #{custom-call.8} parent=44 // loop_body
          %v392 = vld [vmem:[%s386] sm:$0xff]
          %393 = vst [vmem:[%s387] sm:$0xff] %v392
        $region57: #{custom-call.8} parent=44 // loop_footer
          %s394 = scalar_lea.vmem %s386, 8
          %s395 = scalar_lea.vmem %s387, 8
        $region58: #{custom-call.8} parent=44 // loop_footer_branch
          %396 = sbr.rel target = $region54
        $region59: #{custom-call.8} parent=44 // loop_exit
          _
      $region45: #{custom-call.8} parent=40 // pred_fallthru
        _
      %s398 = ssub.s32 1, 1
      %s399 = smul.u32 3, 8
      %s400 = scalar_lea.vmem %s1, %s399
      %s401 = smul.u32 3, 8
      %s402 = scalar_lea.vmem [#allocation1], %s401
      %v403 = vld [vmem:[%s402] sm:%s398]
      %404 = vst [vmem:[%s400] sm:%s398] %v403
    $region41: #{custom-call.8} parent=1 // pred_fallthru
      _
    // Predicated region
    $region60: #{custom-call.8} parent=1 // pred_check
      _
    $region61: #{custom-call.8} parent=1 // pred_check_branch
      %406 = sbr.rel (0) target = $region63
    $region62: #{custom-call.8} parent=1 // pred_region
      %408 = vsyncadd [#allocation4], 0
      %s410 = sshll.u32 [#allocation3], 4
      %s411 = int_to_ptr.vmem [resolvable:$true] %s410
      %s412 = sshll.u32 %s2, 4
      %s413 = int_to_ptr.hbm [resolvable:$true] %s412
      %415 = dma.vmem_to_hbm [thread:$0]  %s411, 16, %s413, [#allocation4]
    $region63: #{custom-call.8} parent=1 // pred_fallthru
      _
    // Predicated region
    $region64: #{custom-call.8} parent=1 // pred_check
      _
    $region65: #{custom-call.8} parent=1 // pred_check_branch
      %417 = sbr.rel (0) target = $region67
    $region66: #{custom-call.8} parent=1 // pred_region
      // Predicated region
      $region68: #{custom-call.8} parent=66 // pred_check
        _
      $region69: #{custom-call.8} parent=66 // pred_check_branch
        %419 = sbr.rel (0) target = $region71
      $region70: #{custom-call.8} parent=66 // pred_region
        %p421 = scmp.gt.s32.totalorder 0, 0
        // Predicated region
        $region72: #{custom-call.8} parent=70 // pred_check
          %p422 = pneg %p421
        $region73: #{custom-call.8} parent=70 // pred_check_branch
          %424 = sbr.rel (%p422) target = $region75
        $region74: #{custom-call.8} parent=70 // pred_region
          %s425 = ssub.s32 0, 1
          %s426 = smul.u32 %s425, 8
          %s427 = scalar_lea.vmem [#allocation6], %s426
          %v428 = vld [vmem:[#allocation6] sm:$0xff]
          // While loop
          $region76: #{custom-call.8} parent=74 // loop_pre_header
            _
          $region77: #{custom-call.8} parent=74 // loop_header
            %s429 = sphi [#allocation6], %s451
            %s430 = sphi %s3, %s452
            %v431 = vphi %v428, %v453
            %s432 = ssub.s32 %s427, 64
            %p433 = scmp.gt.s32.totalorder %s429, %s432
          $region78: #{custom-call.8} parent=74 // loop_header_branch
            %435 = sbr.rel (%p433) target = $region82
          $region79: #{custom-call.8} parent=74 // loop_body
            %436 = vst [vmem:[%s430] sm:$0xff] %v431
            %v437 = vld [vmem:[%s429 + $0x8] sm:$0xff]
            %438 = vst [vmem:[%s430 + $0x8] sm:$0xff] %v437
            %v439 = vld [vmem:[%s429 + $0x10] sm:$0xff]
            %440 = vst [vmem:[%s430 + $0x10] sm:$0xff] %v439
            %v441 = vld [vmem:[%s429 + $0x18] sm:$0xff]
            %442 = vst [vmem:[%s430 + $0x18] sm:$0xff] %v441
            %v443 = vld [vmem:[%s429 + $0x20] sm:$0xff]
            %444 = vst [vmem:[%s430 + $0x20] sm:$0xff] %v443
            %v445 = vld [vmem:[%s429 + $0x28] sm:$0xff]
            %446 = vst [vmem:[%s430 + $0x28] sm:$0xff] %v445
            %v447 = vld [vmem:[%s429 + $0x30] sm:$0xff]
            %448 = vst [vmem:[%s430 + $0x30] sm:$0xff] %v447
            %v449 = vld [vmem:[%s429 + $0x38] sm:$0xff]
            %450 = vst [vmem:[%s430 + $0x38] sm:$0xff] %v449
          $region80: #{custom-call.8} parent=74 // loop_footer
            %s451 = scalar_lea.vmem %s429, 64
            %s452 = scalar_lea.vmem %s430, 64
            %v453 = vld [vmem:[%s429 + $0x40] sm:$0xff]
          $region81: #{custom-call.8} parent=74 // loop_footer_branch
            %454 = sbr.rel target = $region77
          $region82: #{custom-call.8} parent=74 // loop_exit
            _
          // While loop
          $region83: #{custom-call.8} parent=74 // loop_pre_header
            _
          $region84: #{custom-call.8} parent=74 // loop_header
            %s455 = sphi %s429, %s463
            %s456 = sphi %s430, %s464
            %v457 = vphi %v431, %v457
            %p458 = scmp.gt.s32.totalorder %s455, %s427
          $region85: #{custom-call.8} parent=74 // loop_header_branch
            %460 = sbr.rel (%p458) target = $region89
          $region86: #{custom-call.8} parent=74 // loop_body
            %v461 = vld [vmem:[%s455] sm:$0xff]
            %462 = vst [vmem:[%s456] sm:$0xff] %v461
          $region87: #{custom-call.8} parent=74 // loop_footer
            %s463 = scalar_lea.vmem %s455, 8
            %s464 = scalar_lea.vmem %s456, 8
          $region88: #{custom-call.8} parent=74 // loop_footer_branch
            %465 = sbr.rel target = $region84
          $region89: #{custom-call.8} parent=74 // loop_exit
            _
        $region75: #{custom-call.8} parent=70 // pred_fallthru
          _
        %s467 = ssub.s32 2, 1
        %s468 = smul.u32 0, 8
        %s469 = scalar_lea.vmem %s3, %s468
        %s470 = smul.u32 0, 8
        %s471 = scalar_lea.vmem [#allocation6], %s470
        %v472 = vld [vmem:[%s471] sm:%s467]
        %473 = vst [vmem:[%s469] sm:%s467] %v472
      $region71: #{custom-call.8} parent=66 // pred_fallthru
        _
    $region67: #{custom-call.8} parent=1 // pred_fallthru
      _
    // Predicated region
    $region90: #{custom-call.8} parent=1 // pred_check
      _
    $region91: #{custom-call.8} parent=1 // pred_check_branch
      %475 = sbr.rel (0) target = $region93
    $region92: #{custom-call.8} parent=1 // pred_region
      %477 = dma.done [#allocation4], 16
    $region93: #{custom-call.8} parent=1 // pred_fallthru
      _
    // Predicated region
    $region94: #{custom-call.8} parent=1 // pred_check
      _
    $region95: #{custom-call.8} parent=1 // pred_check_branch
      %479 = sbr.rel (0) target = $region97
    $region96: #{custom-call.8} parent=1 // pred_region
      _
    $region97: #{custom-call.8} parent=1 // pred_fallthru
      _
    %480 = vsyncpa [#allocation4], 1

// kernel: surrogate_gnn_forward.5
$region0: #{surrogate_gnn_forward.5}
  #allocation0 [shape = 'u32[]', space=smem, size = 0x4, offset = 0x4, fixed_abs, tag = 'smem constant byte address 0x4 - core index']
  #allocation1 [shape = 'u32[72,128]{1,0:T(1,128)}', space=vmem, size = 0x9000, scoped, tag = 'internal scratch']
  %s0 = inlined_call_operand.vmem [shape: f32[128,18], index: 0, kind: input, shape index: {}]
  %s1 = inlined_call_operand.vmem [shape: f32[128,1], index: 1, kind: input, shape index: {}]
  %s2 = inlined_call_operand.vmem [shape: f32[18,18], index: 2, kind: output, shape index: {}]
  %s3 = sld [smem:[#allocation0]]
  $region49: #{surrogate_gnn_forward.5} parent=0
    _
  %s5 = ssub.s32 1, %s3
  %s6 = scalar_select 0, %s5, %s3
  loop: start=0, step=1, limit=4
  $region2: #{surrogate_gnn_forward.5} parent=0 // loop_pre_header
    _
  $region3: #{surrogate_gnn_forward.5} parent=0 // loop_header
    %s8 = sphi 0, %s12
    %p9 = scmp.ge.s32.totalorder %s8, 4
    %s18 = sphi 0, %s20
    %s21 = sphi 0, %s18
    %s22 = sphi 0, %s21
    %s38 = sphi 0, %s22
    %s44 = sphi 0, %s46
    %s47 = sphi 0, %s44
    %s48 = sphi 0, %s47
    %s64 = sphi 0, %s48
    %s68 = sphi 0, %s68
    %s70 = sphi 0, %s68
    %s71 = sphi 0, %s70
    %s85 = sphi 0, %s71
  $region4: #{surrogate_gnn_forward.5} parent=0 // loop_header_branch
    %11 = sbr.rel (%p9) target = $region8
  $region5: #{surrogate_gnn_forward.5} parent=0 // loop_body
    %s13 = ssub.s32 %s8, 1
    %s14 = ssub.s32 %s8, 2
    %s15 = sadd.s32 %s8, 1
    %s16 = ssub.s32 %s8, %s15
    %p17 = scmp.eq.s32.totalorder %s16, 0
    %s19 = sadd.s32 %s18, 1
    %s20 = scalar_select %p17, %s18, %s19
    %p23 = pneg %p17
    %p24 = scmp.eq.s32.totalorder %s8, 1
    %p25 = por %p23, %p24
    %p26 = scmp.ne.s32.totalorder %s18, %s21
    %p27 = scmp.eq.s32.totalorder %s8, 0
    %p28 = por %p26, %p27
    %p29 = scmp.ne.s32.totalorder %s18, %s21
    %p30 = scmp.eq.s32.totalorder %s13, 1
    %p31 = por %p29, %p30
    %p32 = scmp.ne.s32.totalorder %s21, %s22
    %p33 = scmp.eq.s32.totalorder %s13, 0
    %p34 = por %p32, %p33
    %p35 = scmp.ne.s32.totalorder %s21, %s22
    %p36 = scmp.eq.s32.totalorder %s14, 1
    %p37 = por %p35, %p36
    %p39 = scmp.ne.s32.totalorder %s22, %s38
    %p40 = scmp.eq.s32.totalorder %s14, 0
    %p41 = por %p39, %p40
    %s42 = ssub.s32 %s8, %s15
    %p43 = scmp.eq.s32.totalorder %s42, 0
    %s45 = sadd.s32 %s44, 1
    %s46 = scalar_select %p43, %s44, %s45
    %p49 = pneg %p43
    %p50 = scmp.eq.s32.totalorder %s8, 1
    %p51 = por %p49, %p50
    %p52 = scmp.ne.s32.totalorder %s44, %s47
    %p53 = scmp.eq.s32.totalorder %s8, 0
    %p54 = por %p52, %p53
    %p55 = scmp.ne.s32.totalorder %s44, %s47
    %p56 = scmp.eq.s32.totalorder %s13, 1
    %p57 = por %p55, %p56
    %p58 = scmp.ne.s32.totalorder %s47, %s48
    %p59 = scmp.eq.s32.totalorder %s13, 0
    %p60 = por %p58, %p59
    %p61 = scmp.ne.s32.totalorder %s47, %s48
    %p62 = scmp.eq.s32.totalorder %s14, 1
    %p63 = por %p61, %p62
    %p65 = scmp.ne.s32.totalorder %s48, %s64
    %p66 = scmp.eq.s32.totalorder %s14, 0
    %p67 = por %p65, %p66
    %s69 = sadd.s32 %s68, 1
    %p72 = scmp.eq.s32.totalorder %s8, 1
    %p73 = scmp.ne.s32.totalorder %s68, %s70
    %p74 = scmp.eq.s32.totalorder %s8, 0
    %p75 = por %p73, %p74
    %p76 = scmp.ne.s32.totalorder %s68, %s70
    %p77 = scmp.eq.s32.totalorder %s13, 1
    %p78 = por %p76, %p77
    %p79 = scmp.ne.s32.totalorder %s70, %s71
    %p80 = scmp.eq.s32.totalorder %s13, 0
    %p81 = por %p79, %p80
    %p82 = scmp.ne.s32.totalorder %s70, %s71
    %p83 = scmp.eq.s32.totalorder %s14, 1
    %p84 = por %p82, %p83
    %p86 = scmp.ne.s32.totalorder %s71, %s85
    %p87 = scmp.eq.s32.totalorder %s14, 0
    %p88 = por %p86, %p87
    %p89 = scmp.le.s32.totalorder 1, %s8
    %p90 = scmp.lt.s32.totalorder %s8, 3
    %p91 = pnand %p89, %p90
    %p92 = pneg %p91
    // Predicated region
    $region9: #{surrogate_gnn_forward.5} parent=5 // pred_check
      _
    $region10: #{surrogate_gnn_forward.5} parent=5 // pred_check_branch
      %94 = sbr.rel (%p91) target = $region12
    $region11: #{surrogate_gnn_forward.5} parent=5 // pred_region
      %s95 = ssub.s32 %s8, 1
    $region12: #{surrogate_gnn_forward.5} parent=5 // pred_fallthru
      _
    %p96 = scmp.lt.s32.totalorder %s8, 2
    // Predicated region
    $region13: #{surrogate_gnn_forward.5} parent=5 // pred_check
      %p97 = pneg %p96
    $region14: #{surrogate_gnn_forward.5} parent=5 // pred_check_branch
      %99 = sbr.rel (%p97) target = $region16
    $region15: #{surrogate_gnn_forward.5} parent=5 // pred_region
      // Predicated region
      $region17: #{surrogate_gnn_forward.5} parent=15 // pred_check
        %p100 = pneg %p28
      $region18: #{surrogate_gnn_forward.5} parent=15 // pred_check_branch
        %102 = sbr.rel (%p100) target = $region20
      $region19: #{surrogate_gnn_forward.5} parent=15 // pred_region
        %s103 = smul.u32 8, %s8
        %p104 = scmp.lt.s32.totalorder %s103, 15
        %s105 = scalar_select %p104, %s103, 15
        %s106 = smul.addr %s105, 8
        %s107 = scalar_lea.vmem %s0, %s106
        %s108 = smul.u32 8, %s8
      $region20: #{surrogate_gnn_forward.5} parent=15 // pred_fallthru
        _
      // Predicated region
      $region21: #{surrogate_gnn_forward.5} parent=15 // pred_check
        %p109 = pneg %p54
      $region22: #{surrogate_gnn_forward.5} parent=15 // pred_check_branch
        %111 = sbr.rel (%p109) target = $region24
      $region23: #{surrogate_gnn_forward.5} parent=15 // pred_region
        %s112 = smul.u32 8, %s8
        %p113 = scmp.lt.s32.totalorder %s112, 15
        %s114 = scalar_select %p113, %s112, 15
        %s115 = smul.addr %s114, 8
        %s116 = scalar_lea.vmem %s1, %s115
        %s117 = smul.u32 8, %s8
      $region24: #{surrogate_gnn_forward.5} parent=15 // pred_fallthru
        _
    $region16: #{surrogate_gnn_forward.5} parent=5 // pred_fallthru
      _
    %p118 = scmp.le.s32.totalorder 1, %s8
    %p119 = scmp.lt.s32.totalorder %s8, 3
    %p120 = pnand %p118, %p119
    %p121 = pneg %p120
    // Predicated region
    $region25: #{surrogate_gnn_forward.5} parent=5 // pred_check
      _
    $region26: #{surrogate_gnn_forward.5} parent=5 // pred_check_branch
      %123 = sbr.rel (%p120) target = $region28
    $region27: #{surrogate_gnn_forward.5} parent=5 // pred_region
      %s124 = ssub.s32 %s8, 1
      %s125 = smul.u32 8, %s13
      %p126 = scmp.lt.s32.totalorder %s125, 15
      %s127 = scalar_select %p126, %s125, 15
      %s128 = smul.addr %s127, 8
      %s129 = scalar_lea.vmem %s0, %s128
      %p130 = pneg %p34
      %p131 = pneg %p31
      %s132 = smul.u32 8, %s13
      %p133 = scmp.lt.s32.totalorder %s132, 15
      %s134 = scalar_select %p133, %s132, 15
      %s135 = smul.addr %s134, 8
      %s136 = scalar_lea.vmem %s1, %s135
      %p137 = pneg %p60
      %p138 = pneg %p57
      %p139 = pneg %p81
      %p140 = pneg %p78
      %s141 = smul.u32 8, %s13
      %p142 = scmp.lt.s32.totalorder %s141, 15
      %s143 = scalar_select %p142, %s141, 15
      %s144 = smul.addr %s143, 8
      %s145 = scalar_lea.vmem %s0, %s144
      %s146 = smul.u32 8, %s13
      %s147 = smul.u32 8, %s13
      %p148 = scmp.lt.s32.totalorder %s147, 15
      %s149 = scalar_select %p148, %s147, 15
      %s150 = smul.addr %s149, 8
      %s151 = scalar_lea.vmem %s1, %s150
      %s152 = smul.u32 8, %s13
      %p153 = scmp.eq.s32.totalorder %s13, 0
      // Predicated region
      $region29: #{surrogate_gnn_forward.5} parent=27 // pred_check
        %p154 = pneg %p153
      $region30: #{surrogate_gnn_forward.5} parent=27 // pred_check_branch
        %156 = sbr.rel (%p154) target = $region32
      $region31: #{surrogate_gnn_forward.5} parent=27 // pred_region
        %vm157 = vcmask 146432
        %158 = vst.msk [vmem:[%s2] sm:$0xff] %vm157, 0.0
        %159 = vst.msk [vmem:[%s2 + $0x8] sm:$0xff] %vm157, 0.0
        %vm160 = vcmask 140288
        %161 = vst.msk [vmem:[%s2 + $0x10] sm:$0x3] %vm160, 0.0
      $region32: #{surrogate_gnn_forward.5} parent=27 // pred_fallthru
        _
      %v162 = vld [vmem:[%s145] sm:$0xff]
      %v163 = vld [vmem:[%s145 + $0x8] sm:$0xff]
      %v164 = vld [vmem:[%s145 + $0x10] sm:$0xff]
      %v165 = vld [vmem:[%s145 + $0x18] sm:$0xff]
      %v166 = vld [vmem:[%s145 + $0x20] sm:$0xff]
      %v167 = vld [vmem:[%s145 + $0x28] sm:$0xff]
      %v168 = vld [vmem:[%s145 + $0x30] sm:$0xff]
      %v169 = vld [vmem:[%s145 + $0x38] sm:$0xff]
      %v170 = vld [vmem:[%s151] sm:$0xff]
      %v171 = vld [vmem:[%s151 + $0x8] sm:$0xff]
      %v172 = vld [vmem:[%s151 + $0x10] sm:$0xff]
      %v173 = vld [vmem:[%s151 + $0x18] sm:$0xff]
      %v174 = vld [vmem:[%s151 + $0x20] sm:$0xff]
      %v175 = vld [vmem:[%s151 + $0x28] sm:$0xff]
      %v176 = vld [vmem:[%s151 + $0x30] sm:$0xff]
      %v177 = vld [vmem:[%s151 + $0x38] sm:$0xff]
      %179 = vset.pattern.permute.xlu0 0
      %180 = vperm.xlu0 %179, %v170
      %v181 = vpop.permute.xlu0 %180
      %184 = vset.pattern.permute.xlu0 0
      %185 = vperm.xlu0 %184, %v171
      %v186 = vpop.permute.xlu0 %185
      %189 = vset.pattern.permute.xlu0 0
      %190 = vperm.xlu0 %189, %v172
      %v191 = vpop.permute.xlu0 %190
      %194 = vset.pattern.permute.xlu0 0
      %195 = vperm.xlu0 %194, %v173
      %v196 = vpop.permute.xlu0 %195
      %199 = vset.pattern.permute.xlu0 0
      %200 = vperm.xlu0 %199, %v174
      %v201 = vpop.permute.xlu0 %200
      %204 = vset.pattern.permute.xlu0 0
      %205 = vperm.xlu0 %204, %v175
      %v206 = vpop.permute.xlu0 %205
      %209 = vset.pattern.permute.xlu0 0
      %210 = vperm.xlu0 %209, %v176
      %v211 = vpop.permute.xlu0 %210
      %214 = vset.pattern.permute.xlu0 0
      %215 = vperm.xlu0 %214, %v177
      %v216 = vpop.permute.xlu0 %215
      %v218 = vmul.f32 %v162, %v181
      %v219 = vmul.f32 %v163, %v186
      %v220 = vmul.f32 %v164, %v191
      %v221 = vmul.f32 %v165, %v196
      %v222 = vmul.f32 %v166, %v201
      %v223 = vmul.f32 %v167, %v206
      %v224 = vmul.f32 %v168, %v211
      %v225 = vmul.f32 %v169, %v216
      %v226 = vld [vmem:[%s2] sm:$0xff]
      %v227 = vld [vmem:[%s2 + $0x8] sm:$0xff]
      %v228 = vld [vmem:[%s2 + $0x10] sm:$0x3]
      %229 = vxpose.xlu0.b32.start [1/16] %v162, 128
      %230 = vxpose.xlu0.b32.cont [2/16] %v163, 128
      %231 = vxpose.xlu0.b32.cont [3/16] %v164, 128
      %232 = vxpose.xlu0.b32.cont [4/16] %v165, 128
      %233 = vxpose.xlu0.b32.cont [5/16] %v166, 128
      %234 = vxpose.xlu0.b32.cont [6/16] %v167, 128
      %235 = vxpose.xlu0.b32.cont [7/16] %v168, 128
      %236 = vxpose.xlu0.b32.cont [8/16] %v169, 128
      %237 = vxpose.xlu0.b32.cont [9/16] 0.0, 128
      %238 = vxpose.xlu0.b32.cont [10/16] 0.0, 128
      %239 = vxpose.xlu0.b32.cont [11/16] 0.0, 128
      %240 = vxpose.xlu0.b32.cont [12/16] 0.0, 128
      %241 = vxpose.xlu0.b32.cont [13/16] 0.0, 128
      %242 = vxpose.xlu0.b32.cont [14/16] 0.0, 128
      %243 = vxpose.xlu0.b32.cont [15/16] 0.0, 128
      %244 = vxpose.xlu0.b32.end [16/16] 0.0, 128
      %v245 = vpop.trf.xlu0
      %v246 = vpop.trf.xlu0
      %v247 = vpop.trf.xlu0
      %v248 = vpop.trf.xlu0
      %v249 = vpop.trf.xlu0
      %v250 = vpop.trf.xlu0
      %v251 = vpop.trf.xlu0
      %v252 = vpop.trf.xlu0
      %v253 = vpop.trf.xlu0
      %v254 = vpop.trf.xlu0
      %v255 = vpop.trf.xlu0
      %v256 = vpop.trf.xlu0
      %v257 = vpop.trf.xlu0
      %v258 = vpop.trf.xlu0
      %v259 = vpop.trf.xlu0
      %v260 = vpop.trf.xlu0
      %vm261 = vcmask 523264
      %v263 = vsel %vm261, %v245, 0
      %v266 = vsel %vm261, %v246, 0
      %v269 = vsel %vm261, %v247, 0
      %271 = vmatpush.msra.mxu0 0.0
      %272 = vmatpush.msra.mxu0 0.0
      %273 = vmatpush.msra.mxu0 0.0
      %274 = vmatpush.msra.mxu0 0.0
      %275 = vmatpush.msra.mxu0 0.0
      %276 = vmatpush.msra.mxu0 0.0
      %277 = vmatpush.msra.mxu0 0.0
      %278 = vmatpush.msra.mxu0 0.0
      %279 = vmatpush.msra.mxu0 %v225
      %280 = vmatpush.msra.mxu0 %v224
      %281 = vmatpush.msra.mxu0 %v223
      %282 = vmatpush.msra.mxu0 %v222
      %283 = vmatpush.msra.mxu0 %v221
      %284 = vmatpush.msra.mxu0 %v220
      %285 = vmatpush.msra.mxu0 %v219
      %286 = vmatpush.msra.mxu0 %v218
      %287 = vmatmul.f32.gmra.mxu0 %v263
      %v288 = vpop.f32.mrf.mxu0
      %v289 = vadd.f32 0.0, %v288
      %290 = vmatmul.f32.gmra.mxu0 %v266
      %v291 = vpop.f32.mrf.mxu0
      %v292 = vadd.f32 0.0, %v291
      %293 = vmatmul.f32.gmra.mxu0 %v269
      %v294 = vpop.f32.mrf.mxu0
      %v295 = vadd.f32 0.0, %v294
      %296 = vdwg.mxu0
      %v297 = vadd.f32 %v226, %v289
      %v298 = vadd.f32 %v227, %v292
      %v299 = vadd.f32 %v228, %v295
      %vm300 = vcmask 146432
      %301 = vst.msk [vmem:[%s2] sm:$0xff] %vm300, %v297
      %302 = vst.msk [vmem:[%s2 + $0x8] sm:$0xff] %vm300, %v298
      %vm303 = vcmask 140288
      %304 = vst.msk [vmem:[%s2 + $0x10] sm:$0x3] %vm303, %v299
      %p305 = scmp.eq.s32.totalorder %s13, 1
      // Predicated region
      $region33: #{surrogate_gnn_forward.5} parent=27 // pred_check
        %p306 = pneg %p305
      $region34: #{surrogate_gnn_forward.5} parent=27 // pred_check_branch
        %308 = sbr.rel (%p306) target = $region36
      $region35: #{surrogate_gnn_forward.5} parent=27 // pred_region
        %v309 = vlaneseq
        %v310 = vshrl.u32 %v309, 7
        %v311 = vadd.s32 %v310, 8
        %v312 = vadd.s32 %v310, 16
        %v313 = vlaneseq
        %v314 = vand.u32 %v313, 127
        %v315 = vld [vmem:[%s2] sm:$0xff]
        %v316 = vld [vmem:[%s2 + $0x8] sm:$0xff]
        %v317 = vld [vmem:[%s2 + $0x10] sm:$0x3]
        %vm318 = vcmp.eq.s32.totalorder %v310, %v314
        %vm319 = vcmp.eq.s32.totalorder %v311, %v314
        %vm320 = vcmp.eq.s32.totalorder %v312, %v314
        %v321 = vsel %vm318, 0.1, 0.0
        %v322 = vsel %vm319, 0.1, 0.0
        %v323 = vsel %vm320, 0.1, 0.0
        %v324 = vadd.f32 %v315, %v321
        %v325 = vadd.f32 %v316, %v322
        %v326 = vadd.f32 %v317, %v323
        %327 = vst.msk [vmem:[%s2] sm:$0xff] %vm300, %v324
        %328 = vst.msk [vmem:[%s2 + $0x8] sm:$0xff] %vm300, %v325
        %329 = vst.msk [vmem:[%s2 + $0x10] sm:$0x3] %vm303, %v326
      $region36: #{surrogate_gnn_forward.5} parent=27 // pred_fallthru
        _
      // Predicated region
      $region37: #{surrogate_gnn_forward.5} parent=27 // pred_check
        %p330 = pneg %p78
      $region38: #{surrogate_gnn_forward.5} parent=27 // pred_check_branch
        %332 = sbr.rel (%p330) target = $region40
      $region39: #{surrogate_gnn_forward.5} parent=27 // pred_region
        _
      $region40: #{surrogate_gnn_forward.5} parent=27 // pred_fallthru
        _
      // Predicated region
      $region41: #{surrogate_gnn_forward.5} parent=27 // pred_check
        %p333 = pneg %p78
      $region42: #{surrogate_gnn_forward.5} parent=27 // pred_check_branch
        %335 = sbr.rel (%p333) target = $region44
      $region43: #{surrogate_gnn_forward.5} parent=27 // pred_region
        _
      $region44: #{surrogate_gnn_forward.5} parent=27 // pred_fallthru
        _
    $region28: #{surrogate_gnn_forward.5} parent=5 // pred_fallthru
      _
    %p336 = scmp.le.s32.totalorder 2, %s8
    // Predicated region
    $region45: #{surrogate_gnn_forward.5} parent=5 // pred_check
      %p337 = pneg %p336
    $region46: #{surrogate_gnn_forward.5} parent=5 // pred_check_branch
      %339 = sbr.rel (%p337) target = $region48
    $region47: #{surrogate_gnn_forward.5} parent=5 // pred_region
      %s340 = ssub.s32 %s8, 2
    $region48: #{surrogate_gnn_forward.5} parent=5 // pred_fallthru
      _
  $region6: #{surrogate_gnn_forward.5} parent=0 // loop_footer
    %s12 = sadd.s32 1, %s8
  $region7: #{surrogate_gnn_forward.5} parent=0 // loop_footer_branch
    %7 = sbr.rel target = $region3
  $region8: #{surrogate_gnn_forward.5} parent=0 // loop_exit
    _

// kernel: custom-call.10
$region0: #{custom-call.10}
  %s0 = inlined_call_operand.vmem [shape: f32[1,17,17], index: 0, kind: input, shape index: {}]
  %s1 = inlined_call_operand.vmem [shape: f32[1,17,17], index: 1, kind: output, shape index: {}]
  $region1: #{custom-call.10} parent=0
    #allocation0 [shape = 'u8[12288]{0}', space=vmem, size = 0x3000, scoped, tag = 'operand span for operand 0']
    #allocation1 [shape = 'u8[12288]{0}', space=vmem, size = 0x3000, scoped, tag = 'operand span for operand 1']
    #allocation2 [shape = 'f32[17,17]{1,0}', space=vmem, size = 0x3000, scoped, tag = 'rescaled input a']
    // Predicated region
    $region2: #{custom-call.10} parent=1 // pred_check
      _
    $region3: #{custom-call.10} parent=1 // pred_check_branch
      %3 = sbr.rel (0) target = $region5
    $region4: #{custom-call.10} parent=1 // pred_region
      // Predicated region
      $region6: #{custom-call.10} parent=4 // pred_check
        _
      $region7: #{custom-call.10} parent=4 // pred_check_branch
        %5 = sbr.rel (0) target = $region9
      $region8: #{custom-call.10} parent=4 // pred_region
        // Predicated region
        $region21: #{custom-call.10} parent=8 // pred_check
          _
        $region22: #{custom-call.10} parent=8 // pred_check_branch
          %25 = sbr.rel (0) target = $region24
        $region23: #{custom-call.10} parent=8 // pred_region
          loop: start=0, step=1, limit=1
          $region25: #{custom-call.10} parent=23 // loop_pre_header
            _
          $region26: #{custom-call.10} parent=23 // loop_header
            %s27 = sphi 0, %s31
            %p28 = scmp.ge.s32.totalorder %s27, 1
            %s32 = sphi %s0, %s0
            %s33 = sphi [#allocation0], [#allocation0]
          $region27: #{custom-call.10} parent=23 // loop_header_branch
            %30 = sbr.rel (%p28) target = $region31
          $region28: #{custom-call.10} parent=23 // loop_body
            %v34 = vld [vmem:[%s32] sm:$0xff]
            %35 = vst [vmem:[%s33] sm:$0xff] %v34
            %v36 = vld [vmem:[%s32 + $0x8] sm:$0xff]
            %37 = vst [vmem:[%s33 + $0x8] sm:$0xff] %v36
            %v38 = vld [vmem:[%s32 + $0x10] sm:$0xff]
            %39 = vst [vmem:[%s33 + $0x10] sm:$0xff] %v38
          $region29: #{custom-call.10} parent=23 // loop_footer
            %s31 = sadd.s32 1, %s27
          $region30: #{custom-call.10} parent=23 // loop_footer_branch
            %26 = sbr.rel target = $region26
          $region31: #{custom-call.10} parent=23 // loop_exit
            _
        $region24: #{custom-call.10} parent=8 // pred_fallthru
          _
        // Predicated region
        $region32: #{custom-call.10} parent=8 // pred_check
          _
        $region33: #{custom-call.10} parent=8 // pred_check_branch
          %41 = sbr.rel target = $region35
        $region34: #{custom-call.10} parent=8 // pred_region
          _
        $region35: #{custom-call.10} parent=8 // pred_fallthru
          _
      $region9: #{custom-call.10} parent=4 // pred_fallthru
        _
      // Predicated region
      $region10: #{custom-call.10} parent=4 // pred_check
        _
      $region11: #{custom-call.10} parent=4 // pred_check_branch
        %7 = sbr.rel target = $region13
      $region12: #{custom-call.10} parent=4 // pred_region
        %s9 = ssub.s32 256, 1
        loop: start=0, step=1, limit=1
        $region14: #{custom-call.10} parent=12 // loop_pre_header
          _
        $region15: #{custom-call.10} parent=12 // loop_header
          %s11 = sphi 0, %s15
          %p12 = scmp.ge.s32.totalorder %s11, 1
          %s16 = sphi %s0, %s0
          %s17 = sphi [#allocation0], [#allocation0]
        $region16: #{custom-call.10} parent=12 // loop_header_branch
          %14 = sbr.rel (%p12) target = $region20
        $region17: #{custom-call.10} parent=12 // loop_body
          %v18 = vld [vmem:[%s16] sm:%s9]
          %19 = vst [vmem:[%s17] sm:%s9] %v18
          %v20 = vld [vmem:[%s16 + $0x8] sm:%s9]
          %21 = vst [vmem:[%s17 + $0x8] sm:%s9] %v20
          %v22 = vld [vmem:[%s16 + $0x10] sm:%s9]
          %23 = vst [vmem:[%s17 + $0x10] sm:%s9] %v22
        $region18: #{custom-call.10} parent=12 // loop_footer
          %s15 = sadd.s32 1, %s11
        $region19: #{custom-call.10} parent=12 // loop_footer_branch
          %10 = sbr.rel target = $region15
        $region20: #{custom-call.10} parent=12 // loop_exit
          _
      $region13: #{custom-call.10} parent=4 // pred_fallthru
        _
    $region5: #{custom-call.10} parent=1 // pred_fallthru
      _
    %42 = vnop
    %v43 = vlaneseq
    %v44 = vand.u32 %v43, 127
    %vm45 = vcmp.lt.s32.totalorder %v44, 17
    %v46 = vlaneseq
    %v47 = vshrl.u32 %v46, 7
    %vm49 = vcmp.eq.s32.totalorder %v47, %v44
    %v50 = vld [vmem:[#allocation0] sm:$0xff]
    %v51 = vsel %vm49, %v50, 0.0
    %52 = vadd.xlane.f32.xlu0 %v51
    %v53 = vpop.xlane.xlu0 %52
    %vm54 = vcmp.ge.s32.totalorder %v47, %v44
    %vm55 = vmand %vm54, %vm45
    %v56 = vsel %vm55, %v50, 0.0
    %v57 = vrcp.pop %v53
    %v58 = vmul.f32 %v53, %v57
    %v59 = vsub.f32 1.0, %v58
    %v60 = vmul.f32 %v57, %v59
    %v61 = vadd.f32 %v57, %v60
    %vm62 = vweird.f32 %v53
    %vm63 = vweird.f32 %v57
    %vm64 = vmor %vm62, %vm63
    %v65 = vsel %vm64, %v57, %v61
    %v66 = vand.u32 2147483647, %v53
    %vm67 = vcmp.eq.f32.partialorder %v66, 8.507059e+37
    %v68 = vand.u32 %v53, 2147483648
    %v69 = vor.u32 1.1754944e-38, %v68
    %v70 = vsel %vm67, %v69, %v65
    %v71 = vmul.f32 %v56, %v70
    %72 = vst [vmem:[#allocation2] sm:$0xff] %v71
    %s73 = scalar_lea.vmem [#allocation0], 8
    %s74 = scalar_lea.vmem [#allocation2], 8
    %v75 = vlaneseq
    %v76 = vshrl.u32 %v75, 7
    %v77 = vadd.s32 %v76, 8
    %vm78 = vcmp.eq.s32.totalorder %v77, %v44
    %v79 = vld [vmem:[%s73] sm:$0xff]
    %v80 = vsel %vm78, %v79, 0.0
    %81 = vadd.xlane.f32.xlu0 %v80
    %v82 = vpop.xlane.xlu0 %81
    %vm83 = vcmp.ge.s32.totalorder %v77, %v44
    %vm84 = vmand %vm83, %vm45
    %v85 = vsel %vm84, %v79, 0.0
    %v86 = vrcp.pop %v82
    %v87 = vmul.f32 %v82, %v86
    %v88 = vsub.f32 1.0, %v87
    %v89 = vmul.f32 %v86, %v88
    %v90 = vadd.f32 %v86, %v89
    %vm91 = vweird.f32 %v82
    %vm92 = vweird.f32 %v86
    %vm93 = vmor %vm91, %vm92
    %v94 = vsel %vm93, %v86, %v90
    %v95 = vand.u32 2147483647, %v82
    %vm96 = vcmp.eq.f32.partialorder %v95, 8.507059e+37
    %v97 = vand.u32 %v82, 2147483648
    %v98 = vor.u32 1.1754944e-38, %v97
    %v99 = vsel %vm96, %v98, %v94
    %v100 = vmul.f32 %v85, %v99
    %101 = vst [vmem:[%s74] sm:$0xff] %v100
    %s102 = scalar_lea.vmem [#allocation0], 16
    %s103 = scalar_lea.vmem [#allocation2], 16
    %v104 = vlaneseq
    %v105 = vshrl.u32 %v104, 7
    %v106 = vadd.s32 %v105, 16
    %vm107 = vcmp.eq.s32.totalorder %v106, %v44
    %v108 = vld [vmem:[%s102] sm:$0xff]
    %v109 = vsel %vm107, %v108, 0.0
    %110 = vadd.xlane.f32.xlu0 %v109
    %v111 = vpop.xlane.xlu0 %110
    %vm112 = vcmp.ge.s32.totalorder %v106, %v44
    %vm113 = vmand %vm112, %vm45
    %v114 = vsel %vm113, %v108, 0.0
    %v115 = vrcp.pop %v111
    %v116 = vmul.f32 %v111, %v115
    %v117 = vsub.f32 1.0, %v116
    %v118 = vmul.f32 %v115, %v117
    %v119 = vadd.f32 %v115, %v118
    %vm120 = vweird.f32 %v111
    %vm121 = vweird.f32 %v115
    %vm122 = vmor %vm120, %vm121
    %v123 = vsel %vm122, %v115, %v119
    %v124 = vand.u32 2147483647, %v111
    %vm125 = vcmp.eq.f32.partialorder %v124, 8.507059e+37
    %v126 = vand.u32 %v111, 2147483648
    %v127 = vor.u32 1.1754944e-38, %v126
    %v128 = vsel %vm125, %v127, %v123
    %v129 = vmul.f32 %v114, %v128
    %130 = vst [vmem:[%s103] sm:$0xff] %v129
    %v131 = vlaneseq
    %v132 = vand.u32 %v131, 127
    %v133 = vlaneseq
    %v134 = vshrl.u32 %v133, 7
    %vm136 = vcmp.eq.s32.totalorder %v132, %v134
    %v137 = vlaneseq
    %v138 = vand.u32 %v137, 127
    %vm139 = vcmp.eq.s32.totalorder %v138, 0
    %v140 = vsel %vm139, 1.0, -1.0
    %v141 = vsel %vm136, %v140, 0.0
    %v142 = vlaneseq
    %v143 = vand.u32 %v142, 127
    %v144 = vlaneseq
    %v145 = vshrl.u32 %v144, 7
    %v146 = vadd.s32 %v145, 8
    %vm147 = vcmp.eq.s32.totalorder %v143, %v146
    %v148 = vsel %vm147, -1.0, 0.0
    %v149 = vlaneseq
    %v150 = vand.u32 %v149, 127
    %v151 = vlaneseq
    %v152 = vshrl.u32 %v151, 7
    %v153 = vadd.s32 %v152, 16
    %vm154 = vcmp.eq.s32.totalorder %v150, %v153
    %v155 = vsel %vm154, -1.0, 0.0
    %s156 = scalar_lea.vmem [#allocation2], 1
    %v157 = vld [vmem:[%s156] ss:$0 sm:$0xff]
    %v158 = vxor.u32 %v157, 2147483648
    %v159 = vlaneseq
    %v160 = vand.u32 %v159, 127
    %vm161 = vcmp.eq.s32.totalorder %v160, 1
    %v162 = vmul.f32 %v158, %v141
    %163 = vadd.xlane.f32.xlu0 %v162
    %v164 = vpop.xlane.xlu0 %163
    %v165 = vsel %vm161, %v164, %v141
    %s166 = scalar_lea.vmem [#allocation2], 2
    %v167 = vld [vmem:[%s166] ss:$0 sm:$0xff]
    %v168 = vxor.u32 %v167, 2147483648
    %v169 = vlaneseq
    %v170 = vand.u32 %v169, 127
    %vm171 = vcmp.eq.s32.totalorder %v170, 2
    %v172 = vmul.f32 %v168, %v165
    %173 = vadd.xlane.f32.xlu0 %v172
    %v174 = vpop.xlane.xlu0 %173
    %v175 = vsel %vm171, %v174, %v165
    %s176 = scalar_lea.vmem [#allocation2], 3
    %v177 = vld [vmem:[%s176] ss:$0 sm:$0xff]
    %v178 = vxor.u32 %v177, 2147483648
    %v179 = vlaneseq
    %v180 = vand.u32 %v179, 127
    %vm181 = vcmp.eq.s32.totalorder %v180, 3
    %v182 = vmul.f32 %v178, %v175
    %183 = vadd.xlane.f32.xlu0 %v182
    %v184 = vpop.xlane.xlu0 %183
    %v185 = vsel %vm181, %v184, %v175
    %s186 = scalar_lea.vmem [#allocation2], 4
    %v187 = vld [vmem:[%s186] ss:$0 sm:$0xff]
    %v188 = vxor.u32 %v187, 2147483648
    %v189 = vlaneseq
    %v190 = vand.u32 %v189, 127
    %vm191 = vcmp.eq.s32.totalorder %v190, 4
    %v192 = vmul.f32 %v188, %v185
    %193 = vadd.xlane.f32.xlu0 %v192
    %v194 = vpop.xlane.xlu0 %193
    %v195 = vsel %vm191, %v194, %v185
    %s196 = scalar_lea.vmem [#allocation2], 5
    %v197 = vld [vmem:[%s196] ss:$0 sm:$0xff]
    %v198 = vxor.u32 %v197, 2147483648
    %v199 = vlaneseq
    %v200 = vand.u32 %v199, 127
    %vm201 = vcmp.eq.s32.totalorder %v200, 5
    %v202 = vmul.f32 %v198, %v195
    %203 = vadd.xlane.f32.xlu0 %v202
    %v204 = vpop.xlane.xlu0 %203
    %v205 = vsel %vm201, %v204, %v195
    %s206 = scalar_lea.vmem [#allocation2], 6
    %v207 = vld [vmem:[%s206] ss:$0 sm:$0xff]
    %v208 = vxor.u32 %v207, 2147483648
    %v209 = vlaneseq
    %v210 = vand.u32 %v209, 127
    %vm211 = vcmp.eq.s32.totalorder %v210, 6
    %v212 = vmul.f32 %v208, %v205
    %213 = vadd.xlane.f32.xlu0 %v212
    %v214 = vpop.xlane.xlu0 %213
    %v215 = vsel %vm211, %v214, %v205
    %s216 = scalar_lea.vmem [#allocation2], 7
    %v217 = vld [vmem:[%s216] ss:$0 sm:$0xff]
    %v218 = vxor.u32 %v217, 2147483648
    %v219 = vlaneseq
    %v220 = vand.u32 %v219, 127
    %vm221 = vcmp.eq.s32.totalorder %v220, 7
    %v222 = vmul.f32 %v218, %v215
    %223 = vadd.xlane.f32.xlu0 %v222
    %v224 = vpop.xlane.xlu0 %223
    %v225 = vsel %vm221, %v224, %v215
    %s226 = scalar_lea.vmem [#allocation2], 8
    %v227 = vld [vmem:[%s226] ss:$0 sm:$0xff]
    %v228 = vxor.u32 %v227, 2147483648
    %v229 = vlaneseq
    %v230 = vand.u32 %v229, 127
    %vm231 = vcmp.eq.s32.totalorder %v230, 8
    %v232 = vmul.f32 %v228, %v225
    %233 = vadd.xlane.f32.xlu0 %v232
    %v234 = vpop.xlane.xlu0 %233
    %v235 = vsel %vm231, %v234, %v225
    %v236 = vmul.f32 %v228, %v148
    %237 = vadd.xlane.f32.xlu0 %v236
    %v238 = vpop.xlane.xlu0 %237
    %v239 = vsel %vm231, %v238, %v148
    %s240 = scalar_lea.vmem [#allocation2], 9
    %v241 = vld [vmem:[%s240] ss:$0 sm:$0xff]
    %v242 = vxor.u32 %v241, 2147483648
    %v243 = vlaneseq
    %v244 = vand.u32 %v243, 127
    %vm245 = vcmp.eq.s32.totalorder %v244, 9
    %v246 = vmul.f32 %v242, %v235
    %247 = vadd.xlane.f32.xlu0 %v246
    %v248 = vpop.xlane.xlu0 %247
    %v249 = vsel %vm245, %v248, %v235
    %v250 = vmul.f32 %v242, %v239
    %251 = vadd.xlane.f32.xlu0 %v250
    %v252 = vpop.xlane.xlu0 %251
    %v253 = vsel %vm245, %v252, %v239
    %s254 = scalar_lea.vmem [#allocation2], 10
    %v255 = vld [vmem:[%s254] ss:$0 sm:$0xff]
    %v256 = vxor.u32 %v255, 2147483648
    %v257 = vlaneseq
    %v258 = vand.u32 %v257, 127
    %vm259 = vcmp.eq.s32.totalorder %v258, 10
    %v260 = vmul.f32 %v256, %v249
    %261 = vadd.xlane.f32.xlu0 %v260
    %v262 = vpop.xlane.xlu0 %261
    %v263 = vsel %vm259, %v262, %v249
    %v264 = vmul.f32 %v256, %v253
    %265 = vadd.xlane.f32.xlu0 %v264
    %v266 = vpop.xlane.xlu0 %265
    %v267 = vsel %vm259, %v266, %v253
    %s268 = scalar_lea.vmem [#allocation2], 11
    %v269 = vld [vmem:[%s268] ss:$0 sm:$0xff]
    %v270 = vxor.u32 %v269, 2147483648
    %v271 = vlaneseq
    %v272 = vand.u32 %v271, 127
    %vm273 = vcmp.eq.s32.totalorder %v272, 11
    %v274 = vmul.f32 %v270, %v263
    %275 = vadd.xlane.f32.xlu0 %v274
    %v276 = vpop.xlane.xlu0 %275
    %v277 = vsel %vm273, %v276, %v263
    %v278 = vmul.f32 %v270, %v267
    %279 = vadd.xlane.f32.xlu0 %v278
    %v280 = vpop.xlane.xlu0 %279
    %v281 = vsel %vm273, %v280, %v267
    %s282 = scalar_lea.vmem [#allocation2], 12
    %v283 = vld [vmem:[%s282] ss:$0 sm:$0xff]
    %v284 = vxor.u32 %v283, 2147483648
    %v285 = vlaneseq
    %v286 = vand.u32 %v285, 127
    %vm287 = vcmp.eq.s32.totalorder %v286, 12
    %v288 = vmul.f32 %v284, %v277
    %289 = vadd.xlane.f32.xlu0 %v288
    %v290 = vpop.xlane.xlu0 %289
    %v291 = vsel %vm287, %v290, %v277
    %v292 = vmul.f32 %v284, %v281
    %293 = vadd.xlane.f32.xlu0 %v292
    %v294 = vpop.xlane.xlu0 %293
    %v295 = vsel %vm287, %v294, %v281
    %s296 = scalar_lea.vmem [#allocation2], 13
    %v297 = vld [vmem:[%s296] ss:$0 sm:$0xff]
    %v298 = vxor.u32 %v297, 2147483648
    %v299 = vlaneseq
    %v300 = vand.u32 %v299, 127
    %vm301 = vcmp.eq.s32.totalorder %v300, 13
    %v302 = vmul.f32 %v298, %v291
    %303 = vadd.xlane.f32.xlu0 %v302
    %v304 = vpop.xlane.xlu0 %303
    %v305 = vsel %vm301, %v304, %v291
    %v306 = vmul.f32 %v298, %v295
    %307 = vadd.xlane.f32.xlu0 %v306
    %v308 = vpop.xlane.xlu0 %307
    %v309 = vsel %vm301, %v308, %v295
    %s310 = scalar_lea.vmem [#allocation2], 14
    %v311 = vld [vmem:[%s310] ss:$0 sm:$0xff]
    %v312 = vxor.u32 %v311, 2147483648
    %v313 = vlaneseq
    %v314 = vand.u32 %v313, 127
    %vm315 = vcmp.eq.s32.totalorder %v314, 14
    %v316 = vmul.f32 %v312, %v305
    %317 = vadd.xlane.f32.xlu0 %v316
    %v318 = vpop.xlane.xlu0 %317
    %v319 = vsel %vm315, %v318, %v305
    %v320 = vmul.f32 %v312, %v309
    %321 = vadd.xlane.f32.xlu0 %v320
    %v322 = vpop.xlane.xlu0 %321
    %v323 = vsel %vm315, %v322, %v309
    %s324 = scalar_lea.vmem [#allocation2], 15
    %v325 = vld [vmem:[%s324] ss:$0 sm:$0xff]
    %v326 = vxor.u32 %v325, 2147483648
    %v327 = vlaneseq
    %v328 = vand.u32 %v327, 127
    %vm329 = vcmp.eq.s32.totalorder %v328, 15
    %v330 = vmul.f32 %v326, %v319
    %331 = vadd.xlane.f32.xlu0 %v330
    %v332 = vpop.xlane.xlu0 %331
    %v333 = vsel %vm329, %v332, %v319
    %v334 = vmul.f32 %v326, %v323
    %335 = vadd.xlane.f32.xlu0 %v334
    %v336 = vpop.xlane.xlu0 %335
    %v337 = vsel %vm329, %v336, %v323
    %s338 = scalar_lea.vmem [#allocation2], 16
    %v339 = vld [vmem:[%s338] ss:$0 sm:$0xff]
    %v340 = vxor.u32 %v339, 2147483648
    %v341 = vlaneseq
    %v342 = vand.u32 %v341, 127
    %vm343 = vcmp.eq.s32.totalorder %v342, 16
    %v344 = vmul.f32 %v340, %v333
    %345 = vadd.xlane.f32.xlu0 %v344
    %v346 = vpop.xlane.xlu0 %345
    %v347 = vsel %vm343, %v346, %v333
    %v348 = vmul.f32 %v340, %v337
    %349 = vadd.xlane.f32.xlu0 %v348
    %v350 = vpop.xlane.xlu0 %349
    %v351 = vsel %vm343, %v350, %v337
    %v352 = vmul.f32 %v340, %v155
    %353 = vadd.xlane.f32.xlu0 %v352
    %v354 = vpop.xlane.xlu0 %353
    %v355 = vsel %vm343, %v354, %v155
    %v356 = vrcp.pop %v53
    %v357 = vmul.f32 %v53, %v356
    %v358 = vsub.f32 1.0, %v357
    %v359 = vmul.f32 %v356, %v358
    %v360 = vadd.f32 %v356, %v359
    %vm361 = vweird.f32 %v53
    %vm362 = vweird.f32 %v356
    %vm363 = vmor %vm361, %vm362
    %v364 = vsel %vm363, %v356, %v360
    %v365 = vand.u32 2147483647, %v53
    %vm366 = vcmp.eq.f32.partialorder %v365, 8.507059e+37
    %v367 = vand.u32 %v53, 2147483648
    %v368 = vor.u32 1.1754944e-38, %v367
    %v369 = vsel %vm366, %v368, %v364
    %v370 = vmul.f32 %v347, %v369
    %vm371 = vweird.f32 %v53
    %v372 = vsel %vm371, %v347, %v370
    %373 = vst [vmem:[#allocation1] sm:$0xff] %v372
    %v374 = vrcp.pop %v82
    %v375 = vmul.f32 %v82, %v374
    %v376 = vsub.f32 1.0, %v375
    %v377 = vmul.f32 %v374, %v376
    %v378 = vadd.f32 %v374, %v377
    %vm379 = vweird.f32 %v82
    %vm380 = vweird.f32 %v374
    %vm381 = vmor %vm379, %vm380
    %v382 = vsel %vm381, %v374, %v378
    %v383 = vand.u32 2147483647, %v82
    %vm384 = vcmp.eq.f32.partialorder %v383, 8.507059e+37
    %v385 = vand.u32 %v82, 2147483648
    %v386 = vor.u32 1.1754944e-38, %v385
    %v387 = vsel %vm384, %v386, %v382
    %v388 = vmul.f32 %v351, %v387
    %vm389 = vweird.f32 %v82
    %v390 = vsel %vm389, %v351, %v388
    %s391 = scalar_lea.vmem [#allocation1], 8
    %392 = vst [vmem:[%s391] sm:$0xff] %v390
    %v393 = vrcp.pop %v111
    %v394 = vmul.f32 %v111, %v393
    %v395 = vsub.f32 1.0, %v394
    %v396 = vmul.f32 %v393, %v395
    %v397 = vadd.f32 %v393, %v396
    %vm398 = vweird.f32 %v111
    %vm399 = vweird.f32 %v393
    %vm400 = vmor %vm398, %vm399
    %v401 = vsel %vm400, %v393, %v397
    %v402 = vand.u32 2147483647, %v111
    %vm403 = vcmp.eq.f32.partialorder %v402, 8.507059e+37
    %v404 = vand.u32 %v111, 2147483648
    %v405 = vor.u32 1.1754944e-38, %v404
    %v406 = vsel %vm403, %v405, %v401
    %v407 = vmul.f32 %v355, %v406
    %vm408 = vweird.f32 %v111
    %v409 = vsel %vm408, %v355, %v407
    %s410 = scalar_lea.vmem [#allocation1], 16
    %411 = vst [vmem:[%s410] sm:$0xff] %v409
    // Predicated region
    $region36: #{custom-call.10} parent=1 // pred_check
      _
    $region37: #{custom-call.10} parent=1 // pred_check_branch
      %413 = sbr.rel (0) target = $region39
    $region38: #{custom-call.10} parent=1 // pred_region
      // Predicated region
      $region40: #{custom-call.10} parent=38 // pred_check
        _
      $region41: #{custom-call.10} parent=38 // pred_check_branch
        %415 = sbr.rel (0) target = $region43
      $region42: #{custom-call.10} parent=38 // pred_region
        // Predicated region
        $region55: #{custom-call.10} parent=42 // pred_check
          _
        $region56: #{custom-call.10} parent=42 // pred_check_branch
          %435 = sbr.rel (0) target = $region58
        $region57: #{custom-call.10} parent=42 // pred_region
          loop: start=0, step=1, limit=1
          $region59: #{custom-call.10} parent=57 // loop_pre_header
            _
          $region60: #{custom-call.10} parent=57 // loop_header
            %s437 = sphi 0, %s441
            %p438 = scmp.ge.s32.totalorder %s437, 1
            %s442 = sphi [#allocation1], [#allocation1]
            %s443 = sphi %s1, %s1
          $region61: #{custom-call.10} parent=57 // loop_header_branch
            %440 = sbr.rel (%p438) target = $region65
          $region62: #{custom-call.10} parent=57 // loop_body
            %v444 = vld [vmem:[%s442] sm:$0xff]
            %445 = vst [vmem:[%s443] sm:$0xff] %v444
            %v446 = vld [vmem:[%s442 + $0x8] sm:$0xff]
            %447 = vst [vmem:[%s443 + $0x8] sm:$0xff] %v446
            %v448 = vld [vmem:[%s442 + $0x10] sm:$0xff]
            %449 = vst [vmem:[%s443 + $0x10] sm:$0xff] %v448
          $region63: #{custom-call.10} parent=57 // loop_footer
            %s441 = sadd.s32 1, %s437
          $region64: #{custom-call.10} parent=57 // loop_footer_branch
            %436 = sbr.rel target = $region60
          $region65: #{custom-call.10} parent=57 // loop_exit
            _
        $region58: #{custom-call.10} parent=42 // pred_fallthru
          _
        // Predicated region
        $region66: #{custom-call.10} parent=42 // pred_check
          _
        $region67: #{custom-call.10} parent=42 // pred_check_branch
          %451 = sbr.rel target = $region69
        $region68: #{custom-call.10} parent=42 // pred_region
          _
        $region69: #{custom-call.10} parent=42 // pred_fallthru
          _
      $region43: #{custom-call.10} parent=38 // pred_fallthru
        _
      // Predicated region
      $region44: #{custom-call.10} parent=38 // pred_check
        _
      $region45: #{custom-call.10} parent=38 // pred_check_branch
        %417 = sbr.rel target = $region47
      $region46: #{custom-call.10} parent=38 // pred_region
        %s419 = ssub.s32 256, 1
        loop: start=0, step=1, limit=1
        $region48: #{custom-call.10} parent=46 // loop_pre_header
          _
        $region49: #{custom-call.10} parent=46 // loop_header
          %s421 = sphi 0, %s425
          %p422 = scmp.ge.s32.totalorder %s421, 1
          %s426 = sphi [#allocation1], [#allocation1]
          %s427 = sphi %s1, %s1
        $region50: #{custom-call.10} parent=46 // loop_header_branch
          %424 = sbr.rel (%p422) target = $region54
        $region51: #{custom-call.10} parent=46 // loop_body
          %v428 = vld [vmem:[%s426] sm:%s419]
          %429 = vst [vmem:[%s427] sm:%s419] %v428
          %v430 = vld [vmem:[%s426 + $0x8] sm:%s419]
          %431 = vst [vmem:[%s427 + $0x8] sm:%s419] %v430
          %v432 = vld [vmem:[%s426 + $0x10] sm:%s419]
          %433 = vst [vmem:[%s427 + $0x10] sm:%s419] %v432
        $region52: #{custom-call.10} parent=46 // loop_footer
          %s425 = sadd.s32 1, %s421
        $region53: #{custom-call.10} parent=46 // loop_footer_branch
          %420 = sbr.rel target = $region49
        $region54: #{custom-call.10} parent=46 // loop_exit
          _
      $region47: #{custom-call.10} parent=38 // pred_fallthru
        _
    $region39: #{custom-call.10} parent=1 // pred_fallthru
      _
    %452 = vnop

// kernel: custom-call.9
$region0: #{custom-call.9}
  %s0 = inlined_call_operand.vmem [shape: f32[1,17,17], index: 0, kind: input, shape index: {}]
  %s1 = inlined_call_operand.vmem [shape: f32[1,17,17], index: 1, kind: output, shape index: {}]
  $region1: #{custom-call.9} parent=0
    #allocation0 [shape = 'u8[12288]{0}', space=vmem, size = 0x3000, scoped, tag = 'operand span for operand 0']
    #allocation1 [shape = 'u8[12288]{0}', space=vmem, size = 0x3000, scoped, tag = 'operand span for operand 1']
    #allocation2 [shape = 'f32[17,17]{1,0}', space=vmem, size = 0x3000, scoped, tag = 'rescaled input a']
    // Predicated region
    $region2: #{custom-call.9} parent=1 // pred_check
      _
    $region3: #{custom-call.9} parent=1 // pred_check_branch
      %3 = sbr.rel (0) target = $region5
    $region4: #{custom-call.9} parent=1 // pred_region
      // Predicated region
      $region6: #{custom-call.9} parent=4 // pred_check
        _
      $region7: #{custom-call.9} parent=4 // pred_check_branch
        %5 = sbr.rel (0) target = $region9
      $region8: #{custom-call.9} parent=4 // pred_region
        // Predicated region
        $region21: #{custom-call.9} parent=8 // pred_check
          _
        $region22: #{custom-call.9} parent=8 // pred_check_branch
          %25 = sbr.rel (0) target = $region24
        $region23: #{custom-call.9} parent=8 // pred_region
          loop: start=0, step=1, limit=1
          $region25: #{custom-call.9} parent=23 // loop_pre_header
            _
          $region26: #{custom-call.9} parent=23 // loop_header
            %s27 = sphi 0, %s31
            %p28 = scmp.ge.s32.totalorder %s27, 1
            %s32 = sphi %s0, %s0
            %s33 = sphi [#allocation0], [#allocation0]
          $region27: #{custom-call.9} parent=23 // loop_header_branch
            %30 = sbr.rel (%p28) target = $region31
          $region28: #{custom-call.9} parent=23 // loop_body
            %v34 = vld [vmem:[%s32] sm:$0xff]
            %35 = vst [vmem:[%s33] sm:$0xff] %v34
            %v36 = vld [vmem:[%s32 + $0x8] sm:$0xff]
            %37 = vst [vmem:[%s33 + $0x8] sm:$0xff] %v36
            %v38 = vld [vmem:[%s32 + $0x10] sm:$0xff]
            %39 = vst [vmem:[%s33 + $0x10] sm:$0xff] %v38
          $region29: #{custom-call.9} parent=23 // loop_footer
            %s31 = sadd.s32 1, %s27
          $region30: #{custom-call.9} parent=23 // loop_footer_branch
            %26 = sbr.rel target = $region26
          $region31: #{custom-call.9} parent=23 // loop_exit
            _
        $region24: #{custom-call.9} parent=8 // pred_fallthru
          _
        // Predicated region
        $region32: #{custom-call.9} parent=8 // pred_check
          _
        $region33: #{custom-call.9} parent=8 // pred_check_branch
          %41 = sbr.rel target = $region35
        $region34: #{custom-call.9} parent=8 // pred_region
          _
        $region35: #{custom-call.9} parent=8 // pred_fallthru
          _
      $region9: #{custom-call.9} parent=4 // pred_fallthru
        _
      // Predicated region
      $region10: #{custom-call.9} parent=4 // pred_check
        _
      $region11: #{custom-call.9} parent=4 // pred_check_branch
        %7 = sbr.rel target = $region13
      $region12: #{custom-call.9} parent=4 // pred_region
        %s9 = ssub.s32 256, 1
        loop: start=0, step=1, limit=1
        $region14: #{custom-call.9} parent=12 // loop_pre_header
          _
        $region15: #{custom-call.9} parent=12 // loop_header
          %s11 = sphi 0, %s15
          %p12 = scmp.ge.s32.totalorder %s11, 1
          %s16 = sphi %s0, %s0
          %s17 = sphi [#allocation0], [#allocation0]
        $region16: #{custom-call.9} parent=12 // loop_header_branch
          %14 = sbr.rel (%p12) target = $region20
        $region17: #{custom-call.9} parent=12 // loop_body
          %v18 = vld [vmem:[%s16] sm:%s9]
          %19 = vst [vmem:[%s17] sm:%s9] %v18
          %v20 = vld [vmem:[%s16 + $0x8] sm:%s9]
          %21 = vst [vmem:[%s17 + $0x8] sm:%s9] %v20
          %v22 = vld [vmem:[%s16 + $0x10] sm:%s9]
          %23 = vst [vmem:[%s17 + $0x10] sm:%s9] %v22
        $region18: #{custom-call.9} parent=12 // loop_footer
          %s15 = sadd.s32 1, %s11
        $region19: #{custom-call.9} parent=12 // loop_footer_branch
          %10 = sbr.rel target = $region15
        $region20: #{custom-call.9} parent=12 // loop_exit
          _
      $region13: #{custom-call.9} parent=4 // pred_fallthru
        _
    $region5: #{custom-call.9} parent=1 // pred_fallthru
      _
    %42 = vnop
    %v43 = vlaneseq
    %v44 = vand.u32 %v43, 127
    %vm45 = vcmp.lt.s32.totalorder %v44, 17
    %v46 = vlaneseq
    %v47 = vshrl.u32 %v46, 7
    %vm49 = vcmp.eq.s32.totalorder %v47, %v44
    %v50 = vld [vmem:[#allocation0] sm:$0xff]
    %v51 = vsel %vm49, %v50, 0.0
    %52 = vadd.xlane.f32.xlu0 %v51
    %v53 = vpop.xlane.xlu0 %52
    %vm54 = vcmp.le.s32.totalorder %v47, %v44
    %vm55 = vmand %vm54, %vm45
    %v56 = vsel %vm55, %v50, 0.0
    %v57 = vrcp.pop %v53
    %v58 = vmul.f32 %v53, %v57
    %v59 = vsub.f32 1.0, %v58
    %v60 = vmul.f32 %v57, %v59
    %v61 = vadd.f32 %v57, %v60
    %vm62 = vweird.f32 %v53
    %vm63 = vweird.f32 %v57
    %vm64 = vmor %vm62, %vm63
    %v65 = vsel %vm64, %v57, %v61
    %v66 = vand.u32 2147483647, %v53
    %vm67 = vcmp.eq.f32.partialorder %v66, 8.507059e+37
    %v68 = vand.u32 %v53, 2147483648
    %v69 = vor.u32 1.1754944e-38, %v68
    %v70 = vsel %vm67, %v69, %v65
    %v71 = vmul.f32 %v56, %v70
    %72 = vst [vmem:[#allocation2] sm:$0xff] %v71
    %s73 = scalar_lea.vmem [#allocation0], 8
    %s74 = scalar_lea.vmem [#allocation2], 8
    %v75 = vlaneseq
    %v76 = vshrl.u32 %v75, 7
    %v77 = vadd.s32 %v76, 8
    %vm78 = vcmp.eq.s32.totalorder %v77, %v44
    %v79 = vld [vmem:[%s73] sm:$0xff]
    %v80 = vsel %vm78, %v79, 0.0
    %81 = vadd.xlane.f32.xlu0 %v80
    %v82 = vpop.xlane.xlu0 %81
    %vm83 = vcmp.le.s32.totalorder %v77, %v44
    %vm84 = vmand %vm83, %vm45
    %v85 = vsel %vm84, %v79, 0.0
    %v86 = vrcp.pop %v82
    %v87 = vmul.f32 %v82, %v86
    %v88 = vsub.f32 1.0, %v87
    %v89 = vmul.f32 %v86, %v88
    %v90 = vadd.f32 %v86, %v89
    %vm91 = vweird.f32 %v82
    %vm92 = vweird.f32 %v86
    %vm93 = vmor %vm91, %vm92
    %v94 = vsel %vm93, %v86, %v90
    %v95 = vand.u32 2147483647, %v82
    %vm96 = vcmp.eq.f32.partialorder %v95, 8.507059e+37
    %v97 = vand.u32 %v82, 2147483648
    %v98 = vor.u32 1.1754944e-38, %v97
    %v99 = vsel %vm96, %v98, %v94
    %v100 = vmul.f32 %v85, %v99
    %101 = vst [vmem:[%s74] sm:$0xff] %v100
    %s102 = scalar_lea.vmem [#allocation0], 16
    %s103 = scalar_lea.vmem [#allocation2], 16
    %v104 = vlaneseq
    %v105 = vshrl.u32 %v104, 7
    %v106 = vadd.s32 %v105, 16
    %vm107 = vcmp.eq.s32.totalorder %v106, %v44
    %v108 = vld [vmem:[%s102] sm:$0xff]
    %v109 = vsel %vm107, %v108, 0.0
    %110 = vadd.xlane.f32.xlu0 %v109
    %v111 = vpop.xlane.xlu0 %110
    %vm112 = vcmp.le.s32.totalorder %v106, %v44
    %vm113 = vmand %vm112, %vm45
    %v114 = vsel %vm113, %v108, 0.0
    %v115 = vrcp.pop %v111
    %v116 = vmul.f32 %v111, %v115
    %v117 = vsub.f32 1.0, %v116
    %v118 = vmul.f32 %v115, %v117
    %v119 = vadd.f32 %v115, %v118
    %vm120 = vweird.f32 %v111
    %vm121 = vweird.f32 %v115
    %vm122 = vmor %vm120, %vm121
    %v123 = vsel %vm122, %v115, %v119
    %v124 = vand.u32 2147483647, %v111
    %vm125 = vcmp.eq.f32.partialorder %v124, 8.507059e+37
    %v126 = vand.u32 %v111, 2147483648
    %v127 = vor.u32 1.1754944e-38, %v126
    %v128 = vsel %vm125, %v127, %v123
    %v129 = vmul.f32 %v114, %v128
    %130 = vst [vmem:[%s103] sm:$0xff] %v129
    %v131 = vlaneseq
    %v132 = vand.u32 %v131, 127
    %v133 = vlaneseq
    %v134 = vshrl.u32 %v133, 7
    %vm136 = vcmp.eq.s32.totalorder %v132, %v134
    %v137 = vsel %vm136, -1.0, 0.0
    %v138 = vlaneseq
    %v139 = vand.u32 %v138, 127
    %v140 = vlaneseq
    %v141 = vshrl.u32 %v140, 7
    %v142 = vadd.s32 %v141, 8
    %vm143 = vcmp.eq.s32.totalorder %v139, %v142
    %v144 = vsel %vm143, -1.0, 0.0
    %v145 = vlaneseq
    %v146 = vand.u32 %v145, 127
    %v147 = vlaneseq
    %v148 = vshrl.u32 %v147, 7
    %v149 = vadd.s32 %v148, 16
    %vm150 = vcmp.eq.s32.totalorder %v146, %v149
    %v151 = vlaneseq
    %v152 = vand.u32 %v151, 127
    %vm153 = vcmp.eq.s32.totalorder %v152, 16
    %v154 = vsel %vm153, 1.0, -1.0
    %v155 = vsel %vm150, %v154, 0.0
    %s156 = scalar_lea.vmem [#allocation2], 15
    %v157 = vld [vmem:[%s156] ss:$0 sm:$0xff]
    %v158 = vxor.u32 %v157, 2147483648
    %v159 = vlaneseq
    %v160 = vand.u32 %v159, 127
    %vm161 = vcmp.eq.s32.totalorder %v160, 15
    %v162 = vmul.f32 %v158, %v144
    %163 = vadd.xlane.f32.xlu0 %v162
    %v164 = vpop.xlane.xlu0 %163
    %v165 = vsel %vm161, %v164, %v144
    %v166 = vmul.f32 %v158, %v155
    %167 = vadd.xlane.f32.xlu0 %v166
    %v168 = vpop.xlane.xlu0 %167
    %v169 = vsel %vm161, %v168, %v155
    %s170 = scalar_lea.vmem [#allocation2], 14
    %v171 = vld [vmem:[%s170] ss:$0 sm:$0xff]
    %v172 = vxor.u32 %v171, 2147483648
    %v173 = vlaneseq
    %v174 = vand.u32 %v173, 127
    %vm175 = vcmp.eq.s32.totalorder %v174, 14
    %v176 = vmul.f32 %v172, %v165
    %177 = vadd.xlane.f32.xlu0 %v176
    %v178 = vpop.xlane.xlu0 %177
    %v179 = vsel %vm175, %v178, %v165
    %v180 = vmul.f32 %v172, %v169
    %181 = vadd.xlane.f32.xlu0 %v180
    %v182 = vpop.xlane.xlu0 %181
    %v183 = vsel %vm175, %v182, %v169
    %s184 = scalar_lea.vmem [#allocation2], 13
    %v185 = vld [vmem:[%s184] ss:$0 sm:$0xff]
    %v186 = vxor.u32 %v185, 2147483648
    %v187 = vlaneseq
    %v188 = vand.u32 %v187, 127
    %vm189 = vcmp.eq.s32.totalorder %v188, 13
    %v190 = vmul.f32 %v186, %v179
    %191 = vadd.xlane.f32.xlu0 %v190
    %v192 = vpop.xlane.xlu0 %191
    %v193 = vsel %vm189, %v192, %v179
    %v194 = vmul.f32 %v186, %v183
    %195 = vadd.xlane.f32.xlu0 %v194
    %v196 = vpop.xlane.xlu0 %195
    %v197 = vsel %vm189, %v196, %v183
    %s198 = scalar_lea.vmem [#allocation2], 12
    %v199 = vld [vmem:[%s198] ss:$0 sm:$0xff]
    %v200 = vxor.u32 %v199, 2147483648
    %v201 = vlaneseq
    %v202 = vand.u32 %v201, 127
    %vm203 = vcmp.eq.s32.totalorder %v202, 12
    %v204 = vmul.f32 %v200, %v193
    %205 = vadd.xlane.f32.xlu0 %v204
    %v206 = vpop.xlane.xlu0 %205
    %v207 = vsel %vm203, %v206, %v193
    %v208 = vmul.f32 %v200, %v197
    %209 = vadd.xlane.f32.xlu0 %v208
    %v210 = vpop.xlane.xlu0 %209
    %v211 = vsel %vm203, %v210, %v197
    %s212 = scalar_lea.vmem [#allocation2], 11
    %v213 = vld [vmem:[%s212] ss:$0 sm:$0xff]
    %v214 = vxor.u32 %v213, 2147483648
    %v215 = vlaneseq
    %v216 = vand.u32 %v215, 127
    %vm217 = vcmp.eq.s32.totalorder %v216, 11
    %v218 = vmul.f32 %v214, %v207
    %219 = vadd.xlane.f32.xlu0 %v218
    %v220 = vpop.xlane.xlu0 %219
    %v221 = vsel %vm217, %v220, %v207
    %v222 = vmul.f32 %v214, %v211
    %223 = vadd.xlane.f32.xlu0 %v222
    %v224 = vpop.xlane.xlu0 %223
    %v225 = vsel %vm217, %v224, %v211
    %s226 = scalar_lea.vmem [#allocation2], 10
    %v227 = vld [vmem:[%s226] ss:$0 sm:$0xff]
    %v228 = vxor.u32 %v227, 2147483648
    %v229 = vlaneseq
    %v230 = vand.u32 %v229, 127
    %vm231 = vcmp.eq.s32.totalorder %v230, 10
    %v232 = vmul.f32 %v228, %v221
    %233 = vadd.xlane.f32.xlu0 %v232
    %v234 = vpop.xlane.xlu0 %233
    %v235 = vsel %vm231, %v234, %v221
    %v236 = vmul.f32 %v228, %v225
    %237 = vadd.xlane.f32.xlu0 %v236
    %v238 = vpop.xlane.xlu0 %237
    %v239 = vsel %vm231, %v238, %v225
    %s240 = scalar_lea.vmem [#allocation2], 9
    %v241 = vld [vmem:[%s240] ss:$0 sm:$0xff]
    %v242 = vxor.u32 %v241, 2147483648
    %v243 = vlaneseq
    %v244 = vand.u32 %v243, 127
    %vm245 = vcmp.eq.s32.totalorder %v244, 9
    %v246 = vmul.f32 %v242, %v235
    %247 = vadd.xlane.f32.xlu0 %v246
    %v248 = vpop.xlane.xlu0 %247
    %v249 = vsel %vm245, %v248, %v235
    %v250 = vmul.f32 %v242, %v239
    %251 = vadd.xlane.f32.xlu0 %v250
    %v252 = vpop.xlane.xlu0 %251
    %v253 = vsel %vm245, %v252, %v239
    %s254 = scalar_lea.vmem [#allocation2], 8
    %v255 = vld [vmem:[%s254] ss:$0 sm:$0xff]
    %v256 = vxor.u32 %v255, 2147483648
    %v257 = vlaneseq
    %v258 = vand.u32 %v257, 127
    %vm259 = vcmp.eq.s32.totalorder %v258, 8
    %v260 = vmul.f32 %v256, %v249
    %261 = vadd.xlane.f32.xlu0 %v260
    %v262 = vpop.xlane.xlu0 %261
    %v263 = vsel %vm259, %v262, %v249
    %v264 = vmul.f32 %v256, %v253
    %265 = vadd.xlane.f32.xlu0 %v264
    %v266 = vpop.xlane.xlu0 %265
    %v267 = vsel %vm259, %v266, %v253
    %s268 = scalar_lea.vmem [#allocation2], 7
    %v269 = vld [vmem:[%s268] ss:$0 sm:$0xff]
    %v270 = vxor.u32 %v269, 2147483648
    %v271 = vlaneseq
    %v272 = vand.u32 %v271, 127
    %vm273 = vcmp.eq.s32.totalorder %v272, 7
    %v274 = vmul.f32 %v270, %v137
    %275 = vadd.xlane.f32.xlu0 %v274
    %v276 = vpop.xlane.xlu0 %275
    %v277 = vsel %vm273, %v276, %v137
    %v278 = vmul.f32 %v270, %v263
    %279 = vadd.xlane.f32.xlu0 %v278
    %v280 = vpop.xlane.xlu0 %279
    %v281 = vsel %vm273, %v280, %v263
    %v282 = vmul.f32 %v270, %v267
    %283 = vadd.xlane.f32.xlu0 %v282
    %v284 = vpop.xlane.xlu0 %283
    %v285 = vsel %vm273, %v284, %v267
    %s286 = scalar_lea.vmem [#allocation2], 6
    %v287 = vld [vmem:[%s286] ss:$0 sm:$0xff]
    %v288 = vxor.u32 %v287, 2147483648
    %v289 = vlaneseq
    %v290 = vand.u32 %v289, 127
    %vm291 = vcmp.eq.s32.totalorder %v290, 6
    %v292 = vmul.f32 %v288, %v277
    %293 = vadd.xlane.f32.xlu0 %v292
    %v294 = vpop.xlane.xlu0 %293
    %v295 = vsel %vm291, %v294, %v277
    %v296 = vmul.f32 %v288, %v281
    %297 = vadd.xlane.f32.xlu0 %v296
    %v298 = vpop.xlane.xlu0 %297
    %v299 = vsel %vm291, %v298, %v281
    %v300 = vmul.f32 %v288, %v285
    %301 = vadd.xlane.f32.xlu0 %v300
    %v302 = vpop.xlane.xlu0 %301
    %v303 = vsel %vm291, %v302, %v285
    %s304 = scalar_lea.vmem [#allocation2], 5
    %v305 = vld [vmem:[%s304] ss:$0 sm:$0xff]
    %v306 = vxor.u32 %v305, 2147483648
    %v307 = vlaneseq
    %v308 = vand.u32 %v307, 127
    %vm309 = vcmp.eq.s32.totalorder %v308, 5
    %v310 = vmul.f32 %v306, %v295
    %311 = vadd.xlane.f32.xlu0 %v310
    %v312 = vpop.xlane.xlu0 %311
    %v313 = vsel %vm309, %v312, %v295
    %v314 = vmul.f32 %v306, %v299
    %315 = vadd.xlane.f32.xlu0 %v314
    %v316 = vpop.xlane.xlu0 %315
    %v317 = vsel %vm309, %v316, %v299
    %v318 = vmul.f32 %v306, %v303
    %319 = vadd.xlane.f32.xlu0 %v318
    %v320 = vpop.xlane.xlu0 %319
    %v321 = vsel %vm309, %v320, %v303
    %s322 = scalar_lea.vmem [#allocation2], 4
    %v323 = vld [vmem:[%s322] ss:$0 sm:$0xff]
    %v324 = vxor.u32 %v323, 2147483648
    %v325 = vlaneseq
    %v326 = vand.u32 %v325, 127
    %vm327 = vcmp.eq.s32.totalorder %v326, 4
    %v328 = vmul.f32 %v324, %v313
    %329 = vadd.xlane.f32.xlu0 %v328
    %v330 = vpop.xlane.xlu0 %329
    %v331 = vsel %vm327, %v330, %v313
    %v332 = vmul.f32 %v324, %v317
    %333 = vadd.xlane.f32.xlu0 %v332
    %v334 = vpop.xlane.xlu0 %333
    %v335 = vsel %vm327, %v334, %v317
    %v336 = vmul.f32 %v324, %v321
    %337 = vadd.xlane.f32.xlu0 %v336
    %v338 = vpop.xlane.xlu0 %337
    %v339 = vsel %vm327, %v338, %v321
    %s340 = scalar_lea.vmem [#allocation2], 3
    %v341 = vld [vmem:[%s340] ss:$0 sm:$0xff]
    %v342 = vxor.u32 %v341, 2147483648
    %v343 = vlaneseq
    %v344 = vand.u32 %v343, 127
    %vm345 = vcmp.eq.s32.totalorder %v344, 3
    %v346 = vmul.f32 %v342, %v331
    %347 = vadd.xlane.f32.xlu0 %v346
    %v348 = vpop.xlane.xlu0 %347
    %v349 = vsel %vm345, %v348, %v331
    %v350 = vmul.f32 %v342, %v335
    %351 = vadd.xlane.f32.xlu0 %v350
    %v352 = vpop.xlane.xlu0 %351
    %v353 = vsel %vm345, %v352, %v335
    %v354 = vmul.f32 %v342, %v339
    %355 = vadd.xlane.f32.xlu0 %v354
    %v356 = vpop.xlane.xlu0 %355
    %v357 = vsel %vm345, %v356, %v339
    %s358 = scalar_lea.vmem [#allocation2], 2
    %v359 = vld [vmem:[%s358] ss:$0 sm:$0xff]
    %v360 = vxor.u32 %v359, 2147483648
    %v361 = vlaneseq
    %v362 = vand.u32 %v361, 127
    %vm363 = vcmp.eq.s32.totalorder %v362, 2
    %v364 = vmul.f32 %v360, %v349
    %365 = vadd.xlane.f32.xlu0 %v364
    %v366 = vpop.xlane.xlu0 %365
    %v367 = vsel %vm363, %v366, %v349
    %v368 = vmul.f32 %v360, %v353
    %369 = vadd.xlane.f32.xlu0 %v368
    %v370 = vpop.xlane.xlu0 %369
    %v371 = vsel %vm363, %v370, %v353
    %v372 = vmul.f32 %v360, %v357
    %373 = vadd.xlane.f32.xlu0 %v372
    %v374 = vpop.xlane.xlu0 %373
    %v375 = vsel %vm363, %v374, %v357
    %s376 = scalar_lea.vmem [#allocation2], 1
    %v377 = vld [vmem:[%s376] ss:$0 sm:$0xff]
    %v378 = vxor.u32 %v377, 2147483648
    %v379 = vlaneseq
    %v380 = vand.u32 %v379, 127
    %vm381 = vcmp.eq.s32.totalorder %v380, 1
    %v382 = vmul.f32 %v378, %v367
    %383 = vadd.xlane.f32.xlu0 %v382
    %v384 = vpop.xlane.xlu0 %383
    %v385 = vsel %vm381, %v384, %v367
    %v386 = vmul.f32 %v378, %v371
    %387 = vadd.xlane.f32.xlu0 %v386
    %v388 = vpop.xlane.xlu0 %387
    %v389 = vsel %vm381, %v388, %v371
    %v390 = vmul.f32 %v378, %v375
    %391 = vadd.xlane.f32.xlu0 %v390
    %v392 = vpop.xlane.xlu0 %391
    %v393 = vsel %vm381, %v392, %v375
    %v394 = vld [vmem:[#allocation2] ss:$0 sm:$0xff]
    %v395 = vxor.u32 %v394, 2147483648
    %v396 = vlaneseq
    %v397 = vand.u32 %v396, 127
    %vm398 = vcmp.eq.s32.totalorder %v397, 0
    %v399 = vmul.f32 %v395, %v385
    %400 = vadd.xlane.f32.xlu0 %v399
    %v401 = vpop.xlane.xlu0 %400
    %v402 = vsel %vm398, %v401, %v385
    %v403 = vmul.f32 %v395, %v389
    %404 = vadd.xlane.f32.xlu0 %v403
    %v405 = vpop.xlane.xlu0 %404
    %v406 = vsel %vm398, %v405, %v389
    %v407 = vmul.f32 %v395, %v393
    %408 = vadd.xlane.f32.xlu0 %v407
    %v409 = vpop.xlane.xlu0 %408
    %v410 = vsel %vm398, %v409, %v393
    %v411 = vrcp.pop %v53
    %v412 = vmul.f32 %v53, %v411
    %v413 = vsub.f32 1.0, %v412
    %v414 = vmul.f32 %v411, %v413
    %v415 = vadd.f32 %v411, %v414
    %vm416 = vweird.f32 %v53
    %vm417 = vweird.f32 %v411
    %vm418 = vmor %vm416, %vm417
    %v419 = vsel %vm418, %v411, %v415
    %v420 = vand.u32 2147483647, %v53
    %vm421 = vcmp.eq.f32.partialorder %v420, 8.507059e+37
    %v422 = vand.u32 %v53, 2147483648
    %v423 = vor.u32 1.1754944e-38, %v422
    %v424 = vsel %vm421, %v423, %v419
    %v425 = vmul.f32 %v402, %v424
    %vm426 = vweird.f32 %v53
    %v427 = vsel %vm426, %v402, %v425
    %428 = vst [vmem:[#allocation1] sm:$0xff] %v427
    %v429 = vrcp.pop %v82
    %v430 = vmul.f32 %v82, %v429
    %v431 = vsub.f32 1.0, %v430
    %v432 = vmul.f32 %v429, %v431
    %v433 = vadd.f32 %v429, %v432
    %vm434 = vweird.f32 %v82
    %vm435 = vweird.f32 %v429
    %vm436 = vmor %vm434, %vm435
    %v437 = vsel %vm436, %v429, %v433
    %v438 = vand.u32 2147483647, %v82
    %vm439 = vcmp.eq.f32.partialorder %v438, 8.507059e+37
    %v440 = vand.u32 %v82, 2147483648
    %v441 = vor.u32 1.1754944e-38, %v440
    %v442 = vsel %vm439, %v441, %v437
    %v443 = vmul.f32 %v406, %v442
    %vm444 = vweird.f32 %v82
    %v445 = vsel %vm444, %v406, %v443
    %s446 = scalar_lea.vmem [#allocation1], 8
    %447 = vst [vmem:[%s446] sm:$0xff] %v445
    %v448 = vrcp.pop %v111
    %v449 = vmul.f32 %v111, %v448
    %v450 = vsub.f32 1.0, %v449
    %v451 = vmul.f32 %v448, %v450
    %v452 = vadd.f32 %v448, %v451
    %vm453 = vweird.f32 %v111
    %vm454 = vweird.f32 %v448
    %vm455 = vmor %vm453, %vm454
    %v456 = vsel %vm455, %v448, %v452
    %v457 = vand.u32 2147483647, %v111
    %vm458 = vcmp.eq.f32.partialorder %v457, 8.507059e+37
    %v459 = vand.u32 %v111, 2147483648
    %v460 = vor.u32 1.1754944e-38, %v459
    %v461 = vsel %vm458, %v460, %v456
    %v462 = vmul.f32 %v410, %v461
    %vm463 = vweird.f32 %v111
    %v464 = vsel %vm463, %v410, %v462
    %s465 = scalar_lea.vmem [#allocation1], 16
    %466 = vst [vmem:[%s465] sm:$0xff] %v464
    // Predicated region
    $region36: #{custom-call.9} parent=1 // pred_check
      _
    $region37: #{custom-call.9} parent=1 // pred_check_branch
      %468 = sbr.rel (0) target = $region39
    $region38: #{custom-call.9} parent=1 // pred_region
      // Predicated region
      $region40: #{custom-call.9} parent=38 // pred_check
        _
      $region41: #{custom-call.9} parent=38 // pred_check_branch
        %470 = sbr.rel (0) target = $region43
      $region42: #{custom-call.9} parent=38 // pred_region
        // Predicated region
        $region55: #{custom-call.9} parent=42 // pred_check
          _
        $region56: #{custom-call.9} parent=42 // pred_check_branch
          %490 = sbr.rel (0) target = $region58
        $region57: #{custom-call.9} parent=42 // pred_region
          loop: start=0, step=1, limit=1
          $region59: #{custom-call.9} parent=57 // loop_pre_header
            _
          $region60: #{custom-call.9} parent=57 // loop_header
            %s492 = sphi 0, %s496
            %p493 = scmp.ge.s32.totalorder %s492, 1
            %s497 = sphi [#allocation1], [#allocation1]
            %s498 = sphi %s1, %s1
          $region61: #{custom-call.9} parent=57 // loop_header_branch
            %495 = sbr.rel (%p493) target = $region65
          $region62: #{custom-call.9} parent=57 // loop_body
            %v499 = vld [vmem:[%s497] sm:$0xff]
            %500 = vst [vmem:[%s498] sm:$0xff] %v499
            %v501 = vld [vmem:[%s497 + $0x8] sm:$0xff]
            %502 = vst [vmem:[%s498 + $0x8] sm:$0xff] %v501
            %v503 = vld [vmem:[%s497 + $0x10] sm:$0xff]
            %504 = vst [vmem:[%s498 + $0x10] sm:$0xff] %v503
          $region63: #{custom-call.9} parent=57 // loop_footer
            %s496 = sadd.s32 1, %s492
          $region64: #{custom-call.9} parent=57 // loop_footer_branch
            %491 = sbr.rel target = $region60
          $region65: #{custom-call.9} parent=57 // loop_exit
            _
        $region58: #{custom-call.9} parent=42 // pred_fallthru
          _
        // Predicated region
        $region66: #{custom-call.9} parent=42 // pred_check
          _
        $region67: #{custom-call.9} parent=42 // pred_check_branch
          %506 = sbr.rel target = $region69
        $region68: #{custom-call.9} parent=42 // pred_region
          _
        $region69: #{custom-call.9} parent=42 // pred_fallthru
          _
      $region43: #{custom-call.9} parent=38 // pred_fallthru
        _
      // Predicated region
      $region44: #{custom-call.9} parent=38 // pred_check
        _
      $region45: #{custom-call.9} parent=38 // pred_check_branch
        %472 = sbr.rel target = $region47
      $region46: #{custom-call.9} parent=38 // pred_region
        %s474 = ssub.s32 256, 1
        loop: start=0, step=1, limit=1
        $region48: #{custom-call.9} parent=46 // loop_pre_header
          _
        $region49: #{custom-call.9} parent=46 // loop_header
          %s476 = sphi 0, %s480
          %p477 = scmp.ge.s32.totalorder %s476, 1
          %s481 = sphi [#allocation1], [#allocation1]
          %s482 = sphi %s1, %s1
        $region50: #{custom-call.9} parent=46 // loop_header_branch
          %479 = sbr.rel (%p477) target = $region54
        $region51: #{custom-call.9} parent=46 // loop_body
          %v483 = vld [vmem:[%s481] sm:%s474]
          %484 = vst [vmem:[%s482] sm:%s474] %v483
          %v485 = vld [vmem:[%s481 + $0x8] sm:%s474]
          %486 = vst [vmem:[%s482 + $0x8] sm:%s474] %v485
          %v487 = vld [vmem:[%s481 + $0x10] sm:%s474]
          %488 = vst [vmem:[%s482 + $0x10] sm:%s474] %v487
        $region52: #{custom-call.9} parent=46 // loop_footer
          %s480 = sadd.s32 1, %s476
        $region53: #{custom-call.9} parent=46 // loop_footer_branch
          %475 = sbr.rel target = $region49
        $region54: #{custom-call.9} parent=46 // loop_exit
          _
      $region47: #{custom-call.9} parent=38 // pred_fallthru
        _
    $region39: #{custom-call.9} parent=1 // pred_fallthru
      _
    %507 = vnop

</llo_original>
